<compile_context>
chip_gen: v7x
topology: tpu7x:2x2x1
jax: 0.10.0
libtpu: 0.0.40
codegen_flags: <defaults>
</compile_context>

<pallas_src>
import functools
import math

import jax
import jax.numpy as jnp
from jax.experimental import pallas as pl
from jax.experimental.pallas import tpu as pltpu

HID_DIM = 32
N_HEADS = 4
HEAD_DIM = HID_DIM // N_HEADS
MAX_REL_POS = 168


# ----------------------------------------------------------------------------
# Fused forward kernel (one grid step = Bb batch elements, all heads at once)
# ----------------------------------------------------------------------------
def _fused_rel_mha_kernel(
    q_in_ref, k_in_ref, v_in_ref,
    w_all_ref,            # [4, nh, H, hd]  head-major (wq*scale, wk, wv, wo)
    b_in_ref,             # [3, nh, hd]     (bq*scale, bk, bv)
    bo_ref,               # [1, H]
    relk_frame_t_ref,     # [hd, M]         pre-rotated, lane-padded K band (transposed)
    relv_win_ref,         # [Lq*Lk, hd]     windowed V band table
    o_ref,                # [Bb, Lq, H]
    *, n_heads, head_dim,
):
    Bb, Lq, H = q_in_ref.shape
    Lk = k_in_ref.shape[1]
    M = relk_frame_t_ref.shape[1]          # band modulus (multiple of 128 lanes)
    BH = Bb * n_heads

    # --- fused projection + head split: batched MXU matmul emits [Bb*nh, L, hd] ------
    def project(x_ref, p):
        x = x_ref[...]                                             # [Bb, L, H]
        L = x.shape[1]
        xb = jnp.broadcast_to(x[:, None], (Bb, n_heads, L, H)).reshape(BH, L, H)
        wb = jnp.broadcast_to(w_all_ref[p][None], (Bb, n_heads, H, head_dim))
        wb = wb.reshape(BH, H, head_dim)
        bb = jnp.broadcast_to(b_in_ref[p][None, :, None, :], (Bb, n_heads, 1, head_dim))
        bb = bb.reshape(BH, 1, head_dim)
        y = jnp.einsum("nlc,ncd->nld", xb, wb, preferred_element_type=jnp.float32)
        return y + bb

    qh = project(q_in_ref, 0)              # [BH, Lq, hd]  (1/sqrt(hd) folded on host)
    kh = project(k_in_ref, 1)              # [BH, Lk, hd]
    vh = project(v_in_ref, 2)              # [BH, Lk, hd]

    # --- content-content scores (batched MXU matmul over batch*heads) -----------------
    attn1 = jnp.einsum("nid,njd->nij", qh, kh,
                       preferred_element_type=jnp.float32)         # [BH, Lq, Lk]

    # --- content-position scores: q @ frame-band^T (128-lane MXU output), then one
    #     per-row strided lane rotate (skew) + static slice; no unrolled slices -------
    s_rel = jnp.dot(qh.reshape(BH * Lq, head_dim), relk_frame_t_ref[...],
                    preferred_element_type=jnp.float32)             # [BH*Lq, M]
    s_rel = s_rel.reshape(BH, Lq, M)
    # per-row shift is exactly the row index i (base 0, stride +1); the -(Lq-1) offset
    # is pre-rotated into the band table on the host so all shifts stay in [0, M).
    attn2 = pltpu.roll(s_rel, shift=0, axis=2, stride=1, stride_axis=1)[:, :, :Lk]

    # --- softmax (mask=None path; dropout is identity at inference) -------------------
    # TODO(synk): optional attention mask (mask == 0 -> -1e10) not wired.
    scores = attn1 + attn2
    scores = scores - jnp.max(scores, axis=-1, keepdims=True)
    p_un = jnp.exp(scores)
    attn = p_un * pl.reciprocal(jnp.sum(p_un, axis=-1, keepdims=True), approx=False)

    # --- content values ----------------------------------------------------------------
    w1 = jnp.einsum("nij,njd->nid", attn, vh,
                    preferred_element_type=jnp.float32)             # [BH, Lq, hd]

    # --- position values: select the per-row shifted block of attn with an iota mask,
    #     then a single MXU matmul against the windowed V band table --------------------
    c_idx = jax.lax.broadcasted_iota(jnp.int32, (1, Lq, Lq * Lk), 2)
    i_idx = jax.lax.broadcasted_iota(jnp.int32, (1, Lq, Lq * Lk), 1)
    start = (Lq - 1 - i_idx) * Lk
    keep = jnp.logical_and(c_idx >= start, c_idx < start + Lk)
    attn_rep = jnp.concatenate([attn] * Lq, axis=-1)                # [BH, Lq, Lq*Lk]
    attn_sel = jnp.where(keep, attn_rep, 0.0)
    w2 = jnp.dot(attn_sel.reshape(BH * Lq, Lq * Lk), relv_win_ref[...],
                 preferred_element_type=jnp.float32)                # [BH*Lq, hd]
    w2 = w2.reshape(BH, Lq, head_dim)

    # --- merge heads + output projection: per-head matmul summed over heads -----------
    heads = w1 + w2                                                 # [BH, Lq, hd]
    wo_b = jnp.broadcast_to(w_all_ref[3][None], (Bb, n_heads, H, head_dim))
    wo_b = wo_b.reshape(BH, H, head_dim)
    y = jnp.einsum("nqd,ncd->nqc", heads, wo_b,
                   preferred_element_type=jnp.float32)              # [BH, Lq, H]
    y = y.reshape(Bb, n_heads, Lq, H).sum(axis=1) + bo_ref[...]     # [Bb, Lq, H]
    o_ref[...] = y


# ----------------------------------------------------------------------------
# Host-side table / weight preparation
# ----------------------------------------------------------------------------
def _band_table(table, len_q, len_k, max_rel):
    # band[b] = table[clip(b - (len_q-1), -max_rel, max_rel) + max_rel], b in [0, R)
    rel = jnp.arange(len_q + len_k - 1) - (len_q - 1)
    idx = jnp.clip(rel, -max_rel, max_rel) + max_rel
    return table[idx]                                               # [R, hd]


def _k_frame_table(table, len_q, len_k, max_rel, lanes):
    # Frame column r (modulo `lanes`) holds the embedding for relative offset:
    #   r          for r in [0, len_k)
    #   r - lanes  for r in (lanes - len_q, lanes)
    # zeros elsewhere (never read after the skew).
    r = jnp.arange(lanes)
    off = jnp.where(r < len_k, r, r - lanes)
    valid = jnp.logical_and(off > -len_q, off < len_k)
    idx = jnp.clip(off, -max_rel, max_rel) + max_rel
    return jnp.where(valid[:, None], table[idx], 0.0)               # [lanes, hd]


def _v_window_table(table, len_q, len_k, max_rel):
    # Wv[g*len_k + j] = band_v[j + g]; used with the per-row block-selection mask.
    band = _band_table(table, len_q, len_k, max_rel)                # [R, hd]
    g = jnp.arange(len_q)[:, None]
    j = jnp.arange(len_k)[None, :]
    return band[(g + j).reshape(-1)]                                # [len_q*len_k, hd]


def _head_major(w):
    # [H, H] -> [nh, H, hd] with [h, c, d] = w[c, h*hd + d]
    return w.reshape(HID_DIM, N_HEADS, HEAD_DIM).transpose(1, 0, 2)


@jax.jit
def relative_mha_forward(query, key, value, params):
    B, Lq, H = query.shape
    Lk = key.shape[1]
    Lv = value.shape[1]
    assert Lk == Lv and H == HID_DIM
    R = Lq + Lk - 1
    M = ((R + 127) // 128) * 128                # lane-aligned band modulus (>= R)

    inv_scale = 1.0 / math.sqrt(HEAD_DIM)

    # Stack all projection weights into single head-major operands; fold the 1/sqrt(hd)
    # attention scale into the Q projection (scales both attn1 and attn2, zero kernel cost).
    w_all = jnp.stack([
        _head_major(params["wq"] * inv_scale),
        _head_major(params["wk"]),
        _head_major(params["wv"]),
        params["wo"].reshape(N_HEADS, HEAD_DIM, HID_DIM).transpose(0, 2, 1),
    ])                                           # [4, nh, H, hd]
    b_in = jnp.stack([
        (params["bq"] * inv_scale).reshape(N_HEADS, HEAD_DIM),
        params["bk"].reshape(N_HEADS, HEAD_DIM),
        params["bv"].reshape(N_HEADS, HEAD_DIM),
    ])                                           # [3, nh, hd]
    bo = params["bo"].reshape(1, HID_DIM)

    relk_frame_t = _k_frame_table(params["rel_k_table"], Lq, Lk, MAX_REL_POS, M).T
    relv_win = _v_window_table(params["rel_v_table"], Lq, Lv, MAX_REL_POS)

    # Batch blocking: keep >= 2 grid steps when possible (one per v7x TensorCore);
    # a single step would idle one core.  VMEM per step is tiny at these shapes (watch
    # the O(L^2) score intermediates before scaling L on v7x's 64 MiB).
    if B >= 2 and B % 2 == 0:
        Bb = B // 2
    else:
        Bb = 1
    grid = (B // Bb,)

    kern = functools.partial(_fused_rel_mha_kernel, n_heads=N_HEADS, head_dim=HEAD_DIM)

    def batched(shape):
        return pl.BlockSpec(shape, lambda b: (b,) + (0,) * (len(shape) - 1))

    def shared(shape):   # invariant operands (constant index_map)
        return pl.BlockSpec(shape, lambda b: (0,) * len(shape))

    return pl.pallas_call(
        kern,
        out_shape=jax.ShapeDtypeStruct((B, Lq, HID_DIM), jnp.float32),
        grid=grid,
        in_specs=[
            batched((Bb, Lq, HID_DIM)),                    # query
            batched((Bb, Lk, HID_DIM)),                    # key
            batched((Bb, Lv, HID_DIM)),                    # value
            shared((4, N_HEADS, HID_DIM, HEAD_DIM)),       # stacked projection weights
            shared((3, N_HEADS, HEAD_DIM)),                # stacked q/k/v biases
            shared((1, HID_DIM)),                          # output bias
            shared((HEAD_DIM, M)),                         # K band (pre-rotated, transposed)
            shared((Lq * Lk, HEAD_DIM)),                   # V windowed band
        ],
        out_specs=batched((Bb, Lq, HID_DIM)),
        compiler_params=pltpu.CompilerParams(dimension_semantics=("parallel",)),
    )(query, key, value, w_all, b_in, bo, relk_frame_t, relv_win)


# ----------------------------------------------------------------------------
# Pure-JAX reference mirroring the PyTorch forward (for verification)
# ----------------------------------------------------------------------------
def relative_position(table, len_q, len_k, max_rel):
    rq = jnp.arange(len_q)
    rk = jnp.arange(len_k)
    dist = rk[None, :] - rq[:, None]
    idx = jnp.clip(dist, -max_rel, max_rel) + max_rel
    return table[idx]  # [len_q, len_k, head_dim]


def reference_forward(query, key, value, params):
    B, Lq, H = query.shape
    Lk = key.shape[1]
    Lv = value.shape[1]

    q = query @ params["wq"] + params["bq"]
    k = key @ params["wk"] + params["bk"]
    v = value @ params["wv"] + params["bv"]

    r_q1 = q.reshape(B, Lq, N_HEADS, HEAD_DIM).transpose(0, 2, 1, 3)
    r_k1 = k.reshape(B, Lk, N_HEADS, HEAD_DIM).transpose(0, 2, 1, 3)
    attn1 = jnp.einsum("bhqd,bhkd->bhqk", r_q1, r_k1)

    r_q2 = q.transpose(1, 0, 2).reshape(Lq, B * N_HEADS, HEAD_DIM)
    r_k2 = relative_position(params["rel_k_table"], Lq, Lk, MAX_REL_POS)
    attn2 = jnp.einsum("qnd,qkd->qnk", r_q2, r_k2)
    attn2 = attn2.transpose(1, 0, 2).reshape(B, N_HEADS, Lq, Lk)

    attn = (attn1 + attn2) / math.sqrt(HEAD_DIM)
    attn = jax.nn.softmax(attn, axis=-1)

    r_v1 = v.reshape(B, Lv, N_HEADS, HEAD_DIM).transpose(0, 2, 1, 3)
    weight1 = jnp.einsum("bhqk,bhkd->bhqd", attn, r_v1)

    r_v2 = relative_position(params["rel_v_table"], Lq, Lv, MAX_REL_POS)
    weight2 = attn.transpose(2, 0, 1, 3).reshape(Lq, B * N_HEADS, Lk)
    weight2 = jnp.einsum("qnk,qkd->qnd", weight2, r_v2)
    weight2 = weight2.transpose(1, 0, 2).reshape(B, N_HEADS, Lq, HEAD_DIM)

    x = weight1 + weight2
    x = x.transpose(0, 2, 1, 3).reshape(B, Lq, H)
    return x @ params["wo"] + params["bo"]


# ----------------------------------------------------------------------------
# Main
# ----------------------------------------------------------------------------
def init_params(key):
    keys = jax.random.split(key, 10)
    s = 0.1
    return {
        "wq": s * jax.random.normal(keys[0], (HID_DIM, HID_DIM), jnp.float32),
        "bq": s * jax.random.normal(keys[1], (HID_DIM,), jnp.float32),
        "wk": s * jax.random.normal(keys[2], (HID_DIM, HID_DIM), jnp.float32),
        "bk": s * jax.random.normal(keys[3], (HID_DIM,), jnp.float32),
        "wv": s * jax.random.normal(keys[4], (HID_DIM, HID_DIM), jnp.float32),
        "bv": s * jax.random.normal(keys[5], (HID_DIM,), jnp.float32),
        "wo": s * jax.random.normal(keys[6], (HID_DIM, HID_DIM), jnp.float32),
        "bo": s * jax.random.normal(keys[7], (HID_DIM,), jnp.float32),
        "rel_k_table": s
        * jax.random.normal(keys[8], (2 * MAX_REL_POS + 1, HEAD_DIM), jnp.float32),
        "rel_v_table": s
        * jax.random.normal(keys[9], (2 * MAX_REL_POS + 1, HEAD_DIM), jnp.float32),
    }


if __name__ == "__main__":
    B, L = 2, 8
    root = jax.random.PRNGKey(0)
    k_p, k_q, k_k, k_v = jax.random.split(root, 4)

    params = init_params(k_p)
    query = jax.random.normal(k_q, (B, L, HID_DIM), jnp.float32)
    key = jax.random.normal(k_k, (B, L, HID_DIM), jnp.float32)
    value = jax.random.normal(k_v, (B, L, HID_DIM), jnp.float32)

    out = jax.block_until_ready(relative_mha_forward(query, key, value, params))
    ref = jax.block_until_ready(reference_forward(query, key, value, params))

    assert out.shape == (B, L, HID_DIM)
    err = float(jnp.max(jnp.abs(out - ref)))
    assert jnp.allclose(out, ref, rtol=1e-4, atol=1e-4), f"max abs err = {err}"
    print("KERNEL_OK")
</pallas_src>

<mosaic_0001>
module attributes {stable_mosaic.version = 11 : i64} {
  func.func @_fused_rel_mha_kernel(%arg0: i32, %arg1: memref<1x8x32xf32, #tpu.memory_space<vmem>>, %arg2: memref<1x8x32xf32, #tpu.memory_space<vmem>>, %arg3: memref<1x8x32xf32, #tpu.memory_space<vmem>>, %arg4: memref<4x4x32x8xf32, #tpu.memory_space<vmem>>, %arg5: memref<3x4x8xf32, #tpu.memory_space<vmem>>, %arg6: memref<1x32xf32, #tpu.memory_space<vmem>>, %arg7: memref<8x128xf32, #tpu.memory_space<vmem>>, %arg8: memref<64x8xf32, #tpu.memory_space<vmem>>, %arg9: memref<1x8x32xf32, #tpu.memory_space<vmem>>) attributes {dimension_semantics = [#tpu.dimension_semantics<parallel>], iteration_bounds = array<i64: 2>, scalar_prefetch = 0 : i64, scratch_operands = 0 : i64, tpu.core_type = #tpu.core_type<tc>, window_params = [{transform_indices = @transform_0, window_bounds = array<i64: 1, 8, 32>}, {transform_indices = @transform_1, window_bounds = array<i64: 1, 8, 32>}, {transform_indices = @transform_2, window_bounds = array<i64: 1, 8, 32>}, {pipeline_mode = #tpu.pipeline_mode<synchronous>, transform_indices = @transform_3, window_bounds = array<i64: 4, 4, 32, 8>}, {pipeline_mode = #tpu.pipeline_mode<synchronous>, transform_indices = @transform_4, window_bounds = array<i64: 3, 4, 8>}, {pipeline_mode = #tpu.pipeline_mode<synchronous>, transform_indices = @transform_5, window_bounds = array<i64: 1, 32>}, {pipeline_mode = #tpu.pipeline_mode<synchronous>, transform_indices = @transform_6, window_bounds = array<i64: 8, 128>}, {pipeline_mode = #tpu.pipeline_mode<synchronous>, transform_indices = @transform_7, window_bounds = array<i64: 64, 8>}, {transform_indices = @transform_8, window_bounds = array<i64: 1, 8, 32>}]} {
    %c0 = arith.constant 0 : index
    %c0_0 = arith.constant 0 : index
    %c0_1 = arith.constant 0 : index
    %0 = vector.load %arg1[%c0, %c0_0, %c0_1] : memref<1x8x32xf32, #tpu.memory_space<vmem>>, vector<1x8x32xf32>
    %1 = vector.shape_cast %0 : vector<1x8x32xf32> to vector<1x1x8x32xf32>
    %2 = vector.shape_cast %1 : vector<1x1x8x32xf32> to vector<1x1x8x32xf32>
    %3 = vector.broadcast %2 : vector<1x1x8x32xf32> to vector<1x4x8x32xf32>
    %4 = vector.shape_cast %3 : vector<1x4x8x32xf32> to vector<4x8x32xf32>
    %c0_2 = arith.constant 0 : index
    %c0_3 = arith.constant 0 : index
    %c0_4 = arith.constant 0 : index
    %c0_5 = arith.constant 0 : index
    %5 = vector.load %arg4[%c0_2, %c0_3, %c0_4, %c0_5] : memref<4x4x32x8xf32, #tpu.memory_space<vmem>>, vector<1x4x32x8xf32>
    %6 = vector.shape_cast %5 : vector<1x4x32x8xf32> to vector<4x32x8xf32>
    %7 = vector.shape_cast %6 : vector<4x32x8xf32> to vector<1x4x32x8xf32>
    %8 = vector.shape_cast %7 : vector<1x4x32x8xf32> to vector<4x32x8xf32>
    %c0_6 = arith.constant 0 : index
    %c0_7 = arith.constant 0 : index
    %c0_8 = arith.constant 0 : index
    %9 = vector.load %arg5[%c0_6, %c0_7, %c0_8] : memref<3x4x8xf32, #tpu.memory_space<vmem>>, vector<1x4x8xf32>
    %10 = vector.shape_cast %9 : vector<1x4x8xf32> to vector<4x8xf32>
    %11 = vector.shape_cast %10 : vector<4x8xf32> to vector<1x4x1x8xf32>
    %12 = vector.shape_cast %11 : vector<1x4x1x8xf32> to vector<4x1x8xf32>
    "tpu.trace_start"() <{level = 10 : i32, message = "nlc,ncd->nld"}> : () -> ()
    %cst = arith.constant dense<0.000000e+00> : vector<4x8x8xf32>
    %13 = tpu.matmul %4, %8, %cst {dimension_numbers = #tpu.dot_dimension_numbers<[2], [1], [1], [2], [0, 0, 0, 1, 1, 2], [0], [0]>} : vector<4x8x32xf32>, vector<4x32x8xf32>, vector<4x8x8xf32> -> vector<4x8x8xf32>
    "tpu.trace_stop"() : () -> ()
    %14 = vector.broadcast %12 : vector<4x1x8xf32> to vector<4x8x8xf32>
    %15 = arith.addf %13, %14 : vector<4x8x8xf32>
    %c0_9 = arith.constant 0 : index
    %c0_10 = arith.constant 0 : index
    %c0_11 = arith.constant 0 : index
    %16 = vector.load %arg2[%c0_9, %c0_10, %c0_11] : memref<1x8x32xf32, #tpu.memory_space<vmem>>, vector<1x8x32xf32>
    %17 = vector.shape_cast %16 : vector<1x8x32xf32> to vector<1x1x8x32xf32>
    %18 = vector.shape_cast %17 : vector<1x1x8x32xf32> to vector<1x1x8x32xf32>
    %19 = vector.broadcast %18 : vector<1x1x8x32xf32> to vector<1x4x8x32xf32>
    %20 = vector.shape_cast %19 : vector<1x4x8x32xf32> to vector<4x8x32xf32>
    %c1 = arith.constant 1 : index
    %c0_12 = arith.constant 0 : index
    %c0_13 = arith.constant 0 : index
    %c0_14 = arith.constant 0 : index
    %21 = vector.load %arg4[%c1, %c0_12, %c0_13, %c0_14] : memref<4x4x32x8xf32, #tpu.memory_space<vmem>>, vector<1x4x32x8xf32>
    %22 = vector.shape_cast %21 : vector<1x4x32x8xf32> to vector<4x32x8xf32>
    %23 = vector.shape_cast %22 : vector<4x32x8xf32> to vector<1x4x32x8xf32>
    %24 = vector.shape_cast %23 : vector<1x4x32x8xf32> to vector<4x32x8xf32>
    %c1_15 = arith.constant 1 : index
    %c0_16 = arith.constant 0 : index
    %c0_17 = arith.constant 0 : index
    %25 = vector.load %arg5[%c1_15, %c0_16, %c0_17] : memref<3x4x8xf32, #tpu.memory_space<vmem>>, vector<1x4x8xf32>
    %26 = vector.shape_cast %25 : vector<1x4x8xf32> to vector<4x8xf32>
    %27 = vector.shape_cast %26 : vector<4x8xf32> to vector<1x4x1x8xf32>
    %28 = vector.shape_cast %27 : vector<1x4x1x8xf32> to vector<4x1x8xf32>
    "tpu.trace_start"() <{level = 10 : i32, message = "nlc,ncd->nld"}> : () -> ()
    %cst_18 = arith.constant dense<0.000000e+00> : vector<4x8x8xf32>
    %29 = tpu.matmul %20, %24, %cst_18 {dimension_numbers = #tpu.dot_dimension_numbers<[2], [1], [1], [2], [0, 0, 0, 1, 1, 2], [0], [0]>} : vector<4x8x32xf32>, vector<4x32x8xf32>, vector<4x8x8xf32> -> vector<4x8x8xf32>
    "tpu.trace_stop"() : () -> ()
    %30 = vector.broadcast %28 : vector<4x1x8xf32> to vector<4x8x8xf32>
    %31 = arith.addf %29, %30 : vector<4x8x8xf32>
    %c0_19 = arith.constant 0 : index
    %c0_20 = arith.constant 0 : index
    %c0_21 = arith.constant 0 : index
    %32 = vector.load %arg3[%c0_19, %c0_20, %c0_21] : memref<1x8x32xf32, #tpu.memory_space<vmem>>, vector<1x8x32xf32>
    %33 = vector.shape_cast %32 : vector<1x8x32xf32> to vector<1x1x8x32xf32>
    %34 = vector.shape_cast %33 : vector<1x1x8x32xf32> to vector<1x1x8x32xf32>
    %35 = vector.broadcast %34 : vector<1x1x8x32xf32> to vector<1x4x8x32xf32>
    %36 = vector.shape_cast %35 : vector<1x4x8x32xf32> to vector<4x8x32xf32>
    %c2 = arith.constant 2 : index
    %c0_22 = arith.constant 0 : index
    %c0_23 = arith.constant 0 : index
    %c0_24 = arith.constant 0 : index
    %37 = vector.load %arg4[%c2, %c0_22, %c0_23, %c0_24] : memref<4x4x32x8xf32, #tpu.memory_space<vmem>>, vector<1x4x32x8xf32>
    %38 = vector.shape_cast %37 : vector<1x4x32x8xf32> to vector<4x32x8xf32>
    %39 = vector.shape_cast %38 : vector<4x32x8xf32> to vector<1x4x32x8xf32>
    %40 = vector.shape_cast %39 : vector<1x4x32x8xf32> to vector<4x32x8xf32>
    %c2_25 = arith.constant 2 : index
    %c0_26 = arith.constant 0 : index
    %c0_27 = arith.constant 0 : index
    %41 = vector.load %arg5[%c2_25, %c0_26, %c0_27] : memref<3x4x8xf32, #tpu.memory_space<vmem>>, vector<1x4x8xf32>
    %42 = vector.shape_cast %41 : vector<1x4x8xf32> to vector<4x8xf32>
    %43 = vector.shape_cast %42 : vector<4x8xf32> to vector<1x4x1x8xf32>
    %44 = vector.shape_cast %43 : vector<1x4x1x8xf32> to vector<4x1x8xf32>
    "tpu.trace_start"() <{level = 10 : i32, message = "nlc,ncd->nld"}> : () -> ()
    %cst_28 = arith.constant dense<0.000000e+00> : vector<4x8x8xf32>
    %45 = tpu.matmul %36, %40, %cst_28 {dimension_numbers = #tpu.dot_dimension_numbers<[2], [1], [1], [2], [0, 0, 0, 1, 1, 2], [0], [0]>} : vector<4x8x32xf32>, vector<4x32x8xf32>, vector<4x8x8xf32> -> vector<4x8x8xf32>
    "tpu.trace_stop"() : () -> ()
    %46 = vector.broadcast %44 : vector<4x1x8xf32> to vector<4x8x8xf32>
    %47 = arith.addf %45, %46 : vector<4x8x8xf32>
    "tpu.trace_start"() <{level = 10 : i32, message = "nid,njd->nij"}> : () -> ()
    %cst_29 = arith.constant dense<0.000000e+00> : vector<4x8x8xf32>
    %48 = tpu.matmul %15, %31, %cst_29 {dimension_numbers = #tpu.dot_dimension_numbers<[2], [2], [1], [1], [0, 0, 0, 1, 1, 1], [0], [0]>} : vector<4x8x8xf32>, vector<4x8x8xf32>, vector<4x8x8xf32> -> vector<4x8x8xf32>
    "tpu.trace_stop"() : () -> ()
    %49 = vector.shape_cast %15 : vector<4x8x8xf32> to vector<32x8xf32>
    %c0_30 = arith.constant 0 : index
    %c0_31 = arith.constant 0 : index
    %50 = vector.load %arg7[%c0_30, %c0_31] : memref<8x128xf32, #tpu.memory_space<vmem>>, vector<8x128xf32>
    %cst_32 = arith.constant dense<0.000000e+00> : vector<32x128xf32>
    %51 = tpu.matmul %49, %50, %cst_32 {dimension_numbers = #tpu.dot_dimension_numbers<[1], [0], [0], [1], [0, 0, 1, 1], [], []>} : vector<32x8xf32>, vector<8x128xf32>, vector<32x128xf32> -> vector<32x128xf32>
    %52 = vector.shape_cast %51 : vector<32x128xf32> to vector<4x8x128xf32>
    %c0_i32 = arith.constant 0 : i32
    %53 = tpu.dynamic_rotate %52 by %c0_i32 dim 2 {stride = 1 : si32, stride_dimension = 1 : si32} : vector<4x8x128xf32>, i32 -> vector<4x8x128xf32>
    %54 = vector.extract_strided_slice %53 {offsets = [0, 0, 0], sizes = [4, 8, 8], strides = [1, 1, 1]} : vector<4x8x128xf32> to vector<4x8x8xf32>
    %55 = arith.addf %48, %54 : vector<4x8x8xf32>
    %cst_33 = arith.constant dense<0xFF800000> : vector<4x8xf32>
    %56 = vector.multi_reduction <maximumf>, %55, %cst_33 [2] : vector<4x8x8xf32> to vector<4x8xf32>
    %57 = vector.shape_cast %56 : vector<4x8xf32> to vector<4x8x1xf32>
    %58 = vector.broadcast %57 : vector<4x8x1xf32> to vector<4x8x8xf32>
    %59 = arith.subf %55, %58 : vector<4x8x8xf32>
    %60 = math.exp %59 : vector<4x8x8xf32>
    %cst_34 = arith.constant dense<0.000000e+00> : vector<4x8xf32>
    %61 = vector.multi_reduction <add>, %60, %cst_34 [2] : vector<4x8x8xf32> to vector<4x8xf32>
    %62 = vector.shape_cast %61 : vector<4x8xf32> to vector<4x8x1xf32>
    %63 = tpu.reciprocal %62 : vector<4x8x1xf32> -> vector<4x8x1xf32>
    %64 = vector.broadcast %63 : vector<4x8x1xf32> to vector<4x8x8xf32>
    %65 = arith.mulf %60, %64 : vector<4x8x8xf32>
    "tpu.trace_start"() <{level = 10 : i32, message = "nij,njd->nid"}> : () -> ()
    %cst_35 = arith.constant dense<0.000000e+00> : vector<4x8x8xf32>
    %66 = tpu.matmul %65, %47, %cst_35 {dimension_numbers = #tpu.dot_dimension_numbers<[2], [1], [1], [2], [0, 0, 0, 1, 1, 2], [0], [0]>} : vector<4x8x8xf32>, vector<4x8x8xf32>, vector<4x8x8xf32> -> vector<4x8x8xf32>
    "tpu.trace_stop"() : () -> ()
    %67 = tpu.iota {dimensions = array<i32: 2>} : vector<1x8x64xi32>
    %68 = tpu.iota {dimensions = array<i32: 1>} : vector<1x8x64xi32>
    %c7_i32 = arith.constant 7 : i32
    %69 = vector.broadcast %c7_i32 : i32 to vector<1x8x64xi32>
    %70 = arith.subi %69, %68 : vector<1x8x64xi32>
    %c8_i32 = arith.constant 8 : i32
    %71 = vector.broadcast %c8_i32 : i32 to vector<1x8x64xi32>
    %72 = arith.muli %70, %71 : vector<1x8x64xi32>
    %73 = arith.cmpi sge, %67, %72 : vector<1x8x64xi32>
    %c8_i32_36 = arith.constant 8 : i32
    %74 = vector.broadcast %c8_i32_36 : i32 to vector<1x8x64xi32>
    %75 = arith.addi %72, %74 : vector<1x8x64xi32>
    %76 = arith.cmpi slt, %67, %75 : vector<1x8x64xi32>
    %77 = arith.andi %73, %76 : vector<1x8x64xi1>
    %78 = tpu.concatenate %65, %65, %65, %65, %65, %65, %65, %65 in 2 : vector<4x8x8xf32>, vector<4x8x8xf32>, vector<4x8x8xf32>, vector<4x8x8xf32>, vector<4x8x8xf32>, vector<4x8x8xf32>, vector<4x8x8xf32>, vector<4x8x8xf32> -> vector<4x8x64xf32>
    %cst_37 = arith.constant 0.000000e+00 : f32
    %79 = vector.shape_cast %77 : vector<1x8x64xi1> to vector<1x8x64xi1>
    %80 = vector.broadcast %79 : vector<1x8x64xi1> to vector<4x8x64xi1>
    %81 = vector.broadcast %cst_37 : f32 to vector<4x8x64xf32>
    %82 = arith.select %80, %78, %81 : vector<4x8x64xi1>, vector<4x8x64xf32>
    %83 = vector.shape_cast %82 : vector<4x8x64xf32> to vector<32x64xf32>
    %c0_38 = arith.constant 0 : index
    %c0_39 = arith.constant 0 : index
    %84 = vector.load %arg8[%c0_38, %c0_39] : memref<64x8xf32, #tpu.memory_space<vmem>>, vector<64x8xf32>
    %cst_40 = arith.constant dense<0.000000e+00> : vector<32x8xf32>
    %85 = tpu.matmul %83, %84, %cst_40 {dimension_numbers = #tpu.dot_dimension_numbers<[1], [0], [0], [1], [0, 0, 1, 1], [], []>} : vector<32x64xf32>, vector<64x8xf32>, vector<32x8xf32> -> vector<32x8xf32>
    %86 = vector.shape_cast %85 : vector<32x8xf32> to vector<4x8x8xf32>
    %87 = arith.addf %66, %86 : vector<4x8x8xf32>
    %c3 = arith.constant 3 : index
    %c0_41 = arith.constant 0 : index
    %c0_42 = arith.constant 0 : index
    %c0_43 = arith.constant 0 : index
    %88 = vector.load %arg4[%c3, %c0_41, %c0_42, %c0_43] : memref<4x4x32x8xf32, #tpu.memory_space<vmem>>, vector<1x4x32x8xf32>
    %89 = vector.shape_cast %88 : vector<1x4x32x8xf32> to vector<4x32x8xf32>
    %90 = vector.shape_cast %89 : vector<4x32x8xf32> to vector<1x4x32x8xf32>
    %91 = vector.shape_cast %90 : vector<1x4x32x8xf32> to vector<4x32x8xf32>
    "tpu.trace_start"() <{level = 10 : i32, message = "nqd,ncd->nqc"}> : () -> ()
    %cst_44 = arith.constant dense<0.000000e+00> : vector<4x8x32xf32>
    %92 = tpu.matmul %87, %91, %cst_44 {dimension_numbers = #tpu.dot_dimension_numbers<[2], [2], [1], [1], [0, 0, 0, 1, 1, 1], [0], [0]>} : vector<4x8x8xf32>, vector<4x32x8xf32>, vector<4x8x32xf32> -> vector<4x8x32xf32>
    "tpu.trace_stop"() : () -> ()
    %93 = vector.shape_cast %92 : vector<4x8x32xf32> to vector<1x4x8x32xf32>
    %cst_45 = arith.constant dense<0.000000e+00> : vector<1x8x32xf32>
    %94 = vector.multi_reduction <add>, %93, %cst_45 [1] : vector<1x4x8x32xf32> to vector<1x8x32xf32>
    %c0_46 = arith.constant 0 : index
    %c0_47 = arith.constant 0 : index
    %95 = vector.load %arg6[%c0_46, %c0_47] : memref<1x32xf32, #tpu.memory_space<vmem>>, vector<1x32xf32>
    %96 = vector.shape_cast %95 : vector<1x32xf32> to vector<1x1x32xf32>
    %97 = vector.broadcast %96 : vector<1x1x32xf32> to vector<1x8x32xf32>
    %98 = arith.addf %94, %97 : vector<1x8x32xf32>
    %c0_48 = arith.constant 0 : index
    %c0_49 = arith.constant 0 : index
    %c0_50 = arith.constant 0 : index
    %99 = vector.load %arg9[%c0_48, %c0_49, %c0_50] : memref<1x8x32xf32, #tpu.memory_space<vmem>>, vector<1x8x32xf32>
    tpu.vector_store %arg9[%c0_48, %c0_49, %c0_50], %98 {strides = array<i32>} : memref<1x8x32xf32, #tpu.memory_space<vmem>>, vector<1x8x32xf32>,
    return
  }
  func.func @transform_0(%arg0: i32) -> (i32, i32, i32) {
    %c0_i32 = arith.constant 0 : i32
    %c0_i32_0 = arith.constant 0 : i32
    %c0_i32_1 = arith.constant 0 : i32
    return %arg0, %c0_i32, %c0_i32_0 : i32, i32, i32
  }
  func.func @transform_1(%arg0: i32) -> (i32, i32, i32) {
    %c0_i32 = arith.constant 0 : i32
    %c0_i32_0 = arith.constant 0 : i32
    %c0_i32_1 = arith.constant 0 : i32
    return %arg0, %c0_i32, %c0_i32_0 : i32, i32, i32
  }
  func.func @transform_2(%arg0: i32) -> (i32, i32, i32) {
    %c0_i32 = arith.constant 0 : i32
    %c0_i32_0 = arith.constant 0 : i32
    %c0_i32_1 = arith.constant 0 : i32
    return %arg0, %c0_i32, %c0_i32_0 : i32, i32, i32
  }
  func.func @transform_3(%arg0: i32) -> (i32, i32, i32, i32) {
    %c0_i32 = arith.constant 0 : i32
    %c0_i32_0 = arith.constant 0 : i32
    %c0_i32_1 = arith.constant 0 : i32
    %c0_i32_2 = arith.constant 0 : i32
    %c0_i32_3 = arith.constant 0 : i32
    return %c0_i32, %c0_i32_0, %c0_i32_1, %c0_i32_2 : i32, i32, i32, i32
  }
  func.func @transform_4(%arg0: i32) -> (i32, i32, i32) {
    %c0_i32 = arith.constant 0 : i32
    %c0_i32_0 = arith.constant 0 : i32
    %c0_i32_1 = arith.constant 0 : i32
    %c0_i32_2 = arith.constant 0 : i32
    return %c0_i32, %c0_i32_0, %c0_i32_1 : i32, i32, i32
  }
  func.func @transform_5(%arg0: i32) -> (i32, i32) {
    %c0_i32 = arith.constant 0 : i32
    %c0_i32_0 = arith.constant 0 : i32
    %c0_i32_1 = arith.constant 0 : i32
    return %c0_i32, %c0_i32_0 : i32, i32
  }
  func.func @transform_6(%arg0: i32) -> (i32, i32) {
    %c0_i32 = arith.constant 0 : i32
    %c0_i32_0 = arith.constant 0 : i32
    %c0_i32_1 = arith.constant 0 : i32
    return %c0_i32, %c0_i32_0 : i32, i32
  }
  func.func @transform_7(%arg0: i32) -> (i32, i32) {
    %c0_i32 = arith.constant 0 : i32
    %c0_i32_0 = arith.constant 0 : i32
    %c0_i32_1 = arith.constant 0 : i32
    return %c0_i32, %c0_i32_0 : i32, i32
  }
  func.func @transform_8(%arg0: i32) -> (i32, i32, i32) {
    %c0_i32 = arith.constant 0 : i32
    %c0_i32_0 = arith.constant 0 : i32
    %c0_i32_1 = arith.constant 0 : i32
    return %arg0, %c0_i32, %c0_i32_0 : i32, i32, i32
  }
}

</mosaic_0001>

<llo_original>
// kernel: relative_mha_forward.1
$region0: #{relative_mha_forward.1}
  #allocation0 [shape = 'u32[]', space=smem, size = 0x4, offset = 0x4, fixed_abs, tag = 'smem constant byte address 0x4 - core index']
  #allocation1 [shape = 'u32[144,128]{1,0:T(1,128)}', space=vmem, size = 0x12000, scoped, tag = 'internal scratch']
  %s0 = inlined_call_operand.vmem [shape: f32[2,8,32], index: 0, kind: input, shape index: {}]
  %s1 = inlined_call_operand.vmem [shape: f32[2,8,32], index: 1, kind: input, shape index: {}]
  %s2 = inlined_call_operand.vmem [shape: f32[2,8,32], index: 2, kind: input, shape index: {}]
  %s3 = inlined_call_operand.vmem [shape: f32[4,4,32,8], index: 3, kind: input, shape index: {}]
  %s4 = inlined_call_operand.vmem [shape: f32[3,4,8], index: 4, kind: input, shape index: {}]
  %s5 = inlined_call_operand.vmem [shape: f32[1,32], index: 5, kind: input, shape index: {}]
  %s6 = inlined_call_operand.vmem [shape: f32[8,128], index: 6, kind: input, shape index: {}]
  %s7 = inlined_call_operand.vmem [shape: f32[64,8], index: 7, kind: input, shape index: {}]
  %s8 = inlined_call_operand.hbm [shape: f32[2,8,32], index: 8, kind: output, shape index: {}]
  %s9 = sld [smem:[#allocation0]]
  $region65: #{relative_mha_forward.1} parent=0
    _
  %s11 = ssub.s32 1, %s9
  %s12 = scalar_select 0, %s11, %s9
  $region1: #{relative_mha_forward.1} parent=0
    #allocation2 [shape = 'u8[8192]{0}', space=vmem, size = 0x2000, scoped, tag = 'output window, operand 0']
    #allocation3 [shape = 's32[2]{0}', space=sflag, size = 0x8, scoped, tag = 'scoped memory for relative_mha_forward.1']
    %13 = vsyncpa [#allocation3], 0
    %s14 = scalar_lea.sflag [#allocation3], 1
    %15 = vsyncpa %s14, 0
    loop: start=0, step=1, limit=4
    $region2: #{relative_mha_forward.1} parent=1 // loop_pre_header
      _
    $region3: #{relative_mha_forward.1} parent=1 // loop_header
      %s17 = sphi 0, %s21
      %p18 = scmp.ge.s32.totalorder %s17, 4
      %s27 = sphi 0, %s29
      %s30 = sphi 0, %s27
      %s31 = sphi 0, %s30
      %s47 = sphi 0, %s31
      %s53 = sphi 0, %s55
      %s56 = sphi 0, %s53
      %s57 = sphi 0, %s56
      %s73 = sphi 0, %s57
      %s79 = sphi 0, %s81
      %s82 = sphi 0, %s79
      %s83 = sphi 0, %s82
      %s99 = sphi 0, %s83
      %s103 = sphi 0, %s103
      %s105 = sphi 0, %s103
      %s106 = sphi 0, %s105
      %s120 = sphi 0, %s106
      %s124 = sphi 0, %s124
      %s126 = sphi 0, %s124
      %s127 = sphi 0, %s126
      %s141 = sphi 0, %s127
      %s145 = sphi 0, %s145
      %s147 = sphi 0, %s145
      %s148 = sphi 0, %s147
      %s162 = sphi 0, %s148
      %s166 = sphi 0, %s166
      %s168 = sphi 0, %s166
      %s169 = sphi 0, %s168
      %s183 = sphi 0, %s169
      %s187 = sphi 0, %s187
      %s189 = sphi 0, %s187
      %s190 = sphi 0, %s189
      %s204 = sphi 0, %s190
      %s210 = sphi 0, %s212
      %s213 = sphi 0, %s210
      %s214 = sphi 0, %s213
      %s230 = sphi 0, %s214
    $region4: #{relative_mha_forward.1} parent=1 // loop_header_branch
      %20 = sbr.rel (%p18) target = $region8
    $region5: #{relative_mha_forward.1} parent=1 // loop_body
      %s22 = ssub.s32 %s17, 1
      %s23 = ssub.s32 %s17, 2
      %s24 = sadd.s32 %s17, 1
      %s25 = ssub.s32 %s17, %s24
      %p26 = scmp.eq.s32.totalorder %s25, 0
      %s28 = sadd.s32 %s27, 1
      %s29 = scalar_select %p26, %s27, %s28
      %p32 = pneg %p26
      %p33 = scmp.eq.s32.totalorder %s17, 1
      %p34 = por %p32, %p33
      %p35 = scmp.ne.s32.totalorder %s27, %s30
      %p36 = scmp.eq.s32.totalorder %s17, 0
      %p37 = por %p35, %p36
      %p38 = scmp.ne.s32.totalorder %s27, %s30
      %p39 = scmp.eq.s32.totalorder %s22, 1
      %p40 = por %p38, %p39
      %p41 = scmp.ne.s32.totalorder %s30, %s31
      %p42 = scmp.eq.s32.totalorder %s22, 0
      %p43 = por %p41, %p42
      %p44 = scmp.ne.s32.totalorder %s30, %s31
      %p45 = scmp.eq.s32.totalorder %s23, 1
      %p46 = por %p44, %p45
      %p48 = scmp.ne.s32.totalorder %s31, %s47
      %p49 = scmp.eq.s32.totalorder %s23, 0
      %p50 = por %p48, %p49
      %s51 = ssub.s32 %s17, %s24
      %p52 = scmp.eq.s32.totalorder %s51, 0
      %s54 = sadd.s32 %s53, 1
      %s55 = scalar_select %p52, %s53, %s54
      %p58 = pneg %p52
      %p59 = scmp.eq.s32.totalorder %s17, 1
      %p60 = por %p58, %p59
      %p61 = scmp.ne.s32.totalorder %s53, %s56
      %p62 = scmp.eq.s32.totalorder %s17, 0
      %p63 = por %p61, %p62
      %p64 = scmp.ne.s32.totalorder %s53, %s56
      %p65 = scmp.eq.s32.totalorder %s22, 1
      %p66 = por %p64, %p65
      %p67 = scmp.ne.s32.totalorder %s56, %s57
      %p68 = scmp.eq.s32.totalorder %s22, 0
      %p69 = por %p67, %p68
      %p70 = scmp.ne.s32.totalorder %s56, %s57
      %p71 = scmp.eq.s32.totalorder %s23, 1
      %p72 = por %p70, %p71
      %p74 = scmp.ne.s32.totalorder %s57, %s73
      %p75 = scmp.eq.s32.totalorder %s23, 0
      %p76 = por %p74, %p75
      %s77 = ssub.s32 %s17, %s24
      %p78 = scmp.eq.s32.totalorder %s77, 0
      %s80 = sadd.s32 %s79, 1
      %s81 = scalar_select %p78, %s79, %s80
      %p84 = pneg %p78
      %p85 = scmp.eq.s32.totalorder %s17, 1
      %p86 = por %p84, %p85
      %p87 = scmp.ne.s32.totalorder %s79, %s82
      %p88 = scmp.eq.s32.totalorder %s17, 0
      %p89 = por %p87, %p88
      %p90 = scmp.ne.s32.totalorder %s79, %s82
      %p91 = scmp.eq.s32.totalorder %s22, 1
      %p92 = por %p90, %p91
      %p93 = scmp.ne.s32.totalorder %s82, %s83
      %p94 = scmp.eq.s32.totalorder %s22, 0
      %p95 = por %p93, %p94
      %p96 = scmp.ne.s32.totalorder %s82, %s83
      %p97 = scmp.eq.s32.totalorder %s23, 1
      %p98 = por %p96, %p97
      %p100 = scmp.ne.s32.totalorder %s83, %s99
      %p101 = scmp.eq.s32.totalorder %s23, 0
      %p102 = por %p100, %p101
      %s104 = sadd.s32 %s103, 1
      %p107 = scmp.eq.s32.totalorder %s17, 1
      %p108 = scmp.ne.s32.totalorder %s103, %s105
      %p109 = scmp.eq.s32.totalorder %s17, 0
      %p110 = por %p108, %p109
      %p111 = scmp.ne.s32.totalorder %s103, %s105
      %p112 = scmp.eq.s32.totalorder %s22, 1
      %p113 = por %p111, %p112
      %p114 = scmp.ne.s32.totalorder %s105, %s106
      %p115 = scmp.eq.s32.totalorder %s22, 0
      %p116 = por %p114, %p115
      %p117 = scmp.ne.s32.totalorder %s105, %s106
      %p118 = scmp.eq.s32.totalorder %s23, 1
      %p119 = por %p117, %p118
      %p121 = scmp.ne.s32.totalorder %s106, %s120
      %p122 = scmp.eq.s32.totalorder %s23, 0
      %p123 = por %p121, %p122
      %s125 = sadd.s32 %s124, 1
      %p128 = scmp.eq.s32.totalorder %s17, 1
      %p129 = scmp.ne.s32.totalorder %s124, %s126
      %p130 = scmp.eq.s32.totalorder %s17, 0
      %p131 = por %p129, %p130
      %p132 = scmp.ne.s32.totalorder %s124, %s126
      %p133 = scmp.eq.s32.totalorder %s22, 1
      %p134 = por %p132, %p133
      %p135 = scmp.ne.s32.totalorder %s126, %s127
      %p136 = scmp.eq.s32.totalorder %s22, 0
      %p137 = por %p135, %p136
      %p138 = scmp.ne.s32.totalorder %s126, %s127
      %p139 = scmp.eq.s32.totalorder %s23, 1
      %p140 = por %p138, %p139
      %p142 = scmp.ne.s32.totalorder %s127, %s141
      %p143 = scmp.eq.s32.totalorder %s23, 0
      %p144 = por %p142, %p143
      %s146 = sadd.s32 %s145, 1
      %p149 = scmp.eq.s32.totalorder %s17, 1
      %p150 = scmp.ne.s32.totalorder %s145, %s147
      %p151 = scmp.eq.s32.totalorder %s17, 0
      %p152 = por %p150, %p151
      %p153 = scmp.ne.s32.totalorder %s145, %s147
      %p154 = scmp.eq.s32.totalorder %s22, 1
      %p155 = por %p153, %p154
      %p156 = scmp.ne.s32.totalorder %s147, %s148
      %p157 = scmp.eq.s32.totalorder %s22, 0
      %p158 = por %p156, %p157
      %p159 = scmp.ne.s32.totalorder %s147, %s148
      %p160 = scmp.eq.s32.totalorder %s23, 1
      %p161 = por %p159, %p160
      %p163 = scmp.ne.s32.totalorder %s148, %s162
      %p164 = scmp.eq.s32.totalorder %s23, 0
      %p165 = por %p163, %p164
      %s167 = sadd.s32 %s166, 1
      %p170 = scmp.eq.s32.totalorder %s17, 1
      %p171 = scmp.ne.s32.totalorder %s166, %s168
      %p172 = scmp.eq.s32.totalorder %s17, 0
      %p173 = por %p171, %p172
      %p174 = scmp.ne.s32.totalorder %s166, %s168
      %p175 = scmp.eq.s32.totalorder %s22, 1
      %p176 = por %p174, %p175
      %p177 = scmp.ne.s32.totalorder %s168, %s169
      %p178 = scmp.eq.s32.totalorder %s22, 0
      %p179 = por %p177, %p178
      %p180 = scmp.ne.s32.totalorder %s168, %s169
      %p181 = scmp.eq.s32.totalorder %s23, 1
      %p182 = por %p180, %p181
      %p184 = scmp.ne.s32.totalorder %s169, %s183
      %p185 = scmp.eq.s32.totalorder %s23, 0
      %p186 = por %p184, %p185
      %s188 = sadd.s32 %s187, 1
      %p191 = scmp.eq.s32.totalorder %s17, 1
      %p192 = scmp.ne.s32.totalorder %s187, %s189
      %p193 = scmp.eq.s32.totalorder %s17, 0
      %p194 = por %p192, %p193
      %p195 = scmp.ne.s32.totalorder %s187, %s189
      %p196 = scmp.eq.s32.totalorder %s22, 1
      %p197 = por %p195, %p196
      %p198 = scmp.ne.s32.totalorder %s189, %s190
      %p199 = scmp.eq.s32.totalorder %s22, 0
      %p200 = por %p198, %p199
      %p201 = scmp.ne.s32.totalorder %s189, %s190
      %p202 = scmp.eq.s32.totalorder %s23, 1
      %p203 = por %p201, %p202
      %p205 = scmp.ne.s32.totalorder %s190, %s204
      %p206 = scmp.eq.s32.totalorder %s23, 0
      %p207 = por %p205, %p206
      %s208 = ssub.s32 %s17, %s24
      %p209 = scmp.eq.s32.totalorder %s208, 0
      %s211 = sadd.s32 %s210, 1
      %s212 = scalar_select %p209, %s210, %s211
      %p215 = pneg %p209
      %p216 = scmp.eq.s32.totalorder %s17, 1
      %p217 = por %p215, %p216
      %p218 = scmp.ne.s32.totalorder %s210, %s213
      %p219 = scmp.eq.s32.totalorder %s17, 0
      %p220 = por %p218, %p219
      %p221 = scmp.ne.s32.totalorder %s210, %s213
      %p222 = scmp.eq.s32.totalorder %s22, 1
      %p223 = por %p221, %p222
      %p224 = scmp.ne.s32.totalorder %s213, %s214
      %p225 = scmp.eq.s32.totalorder %s22, 0
      %p226 = por %p224, %p225
      %p227 = scmp.ne.s32.totalorder %s213, %s214
      %p228 = scmp.eq.s32.totalorder %s23, 1
      %p229 = por %p227, %p228
      %p231 = scmp.ne.s32.totalorder %s214, %s230
      %p232 = scmp.eq.s32.totalorder %s23, 0
      %p233 = por %p231, %p232
      %p234 = scmp.le.s32.totalorder 1, %s17
      %p235 = scmp.lt.s32.totalorder %s17, 3
      %p236 = pnand %p234, %p235
      %p237 = pneg %p236
      // Predicated region
      $region9: #{relative_mha_forward.1} parent=5 // pred_check
        _
      $region10: #{relative_mha_forward.1} parent=5 // pred_check_branch
        %239 = sbr.rel (%p236) target = $region12
      $region11: #{relative_mha_forward.1} parent=5 // pred_region
        %s240 = ssub.s32 %s17, 1
        // Predicated region
        $region13: #{relative_mha_forward.1} parent=11 // pred_check
          %p241 = pneg %p116
        $region14: #{relative_mha_forward.1} parent=11 // pred_check_branch
          %243 = sbr.rel (%p241) target = $region16
        $region15: #{relative_mha_forward.1} parent=11 // pred_region
          _
        $region16: #{relative_mha_forward.1} parent=11 // pred_fallthru
          _
        // Predicated region
        $region17: #{relative_mha_forward.1} parent=11 // pred_check
          %p244 = pneg %p137
        $region18: #{relative_mha_forward.1} parent=11 // pred_check_branch
          %246 = sbr.rel (%p244) target = $region20
        $region19: #{relative_mha_forward.1} parent=11 // pred_region
          _
        $region20: #{relative_mha_forward.1} parent=11 // pred_fallthru
          _
        // Predicated region
        $region21: #{relative_mha_forward.1} parent=11 // pred_check
          %p247 = pneg %p158
        $region22: #{relative_mha_forward.1} parent=11 // pred_check_branch
          %249 = sbr.rel (%p247) target = $region24
        $region23: #{relative_mha_forward.1} parent=11 // pred_region
          _
        $region24: #{relative_mha_forward.1} parent=11 // pred_fallthru
          _
        // Predicated region
        $region25: #{relative_mha_forward.1} parent=11 // pred_check
          %p250 = pneg %p179
        $region26: #{relative_mha_forward.1} parent=11 // pred_check_branch
          %252 = sbr.rel (%p250) target = $region28
        $region27: #{relative_mha_forward.1} parent=11 // pred_region
          _
        $region28: #{relative_mha_forward.1} parent=11 // pred_fallthru
          _
        // Predicated region
        $region29: #{relative_mha_forward.1} parent=11 // pred_check
          %p253 = pneg %p200
        $region30: #{relative_mha_forward.1} parent=11 // pred_check_branch
          %255 = sbr.rel (%p253) target = $region32
        $region31: #{relative_mha_forward.1} parent=11 // pred_region
          _
        $region32: #{relative_mha_forward.1} parent=11 // pred_fallthru
          _
      $region12: #{relative_mha_forward.1} parent=5 // pred_fallthru
        _
      %p256 = scmp.lt.s32.totalorder %s17, 2
      // Predicated region
      $region33: #{relative_mha_forward.1} parent=5 // pred_check
        %p257 = pneg %p256
      $region34: #{relative_mha_forward.1} parent=5 // pred_check_branch
        %259 = sbr.rel (%p257) target = $region36
      $region35: #{relative_mha_forward.1} parent=5 // pred_region
        // Predicated region
        $region37: #{relative_mha_forward.1} parent=35 // pred_check
          %p260 = pneg %p37
        $region38: #{relative_mha_forward.1} parent=35 // pred_check_branch
          %262 = sbr.rel (%p260) target = $region40
        $region39: #{relative_mha_forward.1} parent=35 // pred_region
          %p263 = scmp.lt.s32.totalorder %s17, 1
          %s264 = scalar_select %p263, %s17, 1
          %s265 = smul.addr %s264, 8
          %s266 = scalar_lea.vmem %s0, %s265
        $region40: #{relative_mha_forward.1} parent=35 // pred_fallthru
          _
        // Predicated region
        $region41: #{relative_mha_forward.1} parent=35 // pred_check
          %p267 = pneg %p63
        $region42: #{relative_mha_forward.1} parent=35 // pred_check_branch
          %269 = sbr.rel (%p267) target = $region44
        $region43: #{relative_mha_forward.1} parent=35 // pred_region
          %p270 = scmp.lt.s32.totalorder %s17, 1
          %s271 = scalar_select %p270, %s17, 1
          %s272 = smul.addr %s271, 8
          %s273 = scalar_lea.vmem %s1, %s272
        $region44: #{relative_mha_forward.1} parent=35 // pred_fallthru
          _
        // Predicated region
        $region45: #{relative_mha_forward.1} parent=35 // pred_check
          %p274 = pneg %p89
        $region46: #{relative_mha_forward.1} parent=35 // pred_check_branch
          %276 = sbr.rel (%p274) target = $region48
        $region47: #{relative_mha_forward.1} parent=35 // pred_region
          %p277 = scmp.lt.s32.totalorder %s17, 1
          %s278 = scalar_select %p277, %s17, 1
          %s279 = smul.addr %s278, 8
          %s280 = scalar_lea.vmem %s2, %s279
        $region48: #{relative_mha_forward.1} parent=35 // pred_fallthru
          _
      $region36: #{relative_mha_forward.1} parent=5 // pred_fallthru
        _
      %p281 = scmp.le.s32.totalorder 1, %s17
      %p282 = scmp.lt.s32.totalorder %s17, 3
      %p283 = pnand %p281, %p282
      %p284 = pneg %p283
      // Predicated region
      $region49: #{relative_mha_forward.1} parent=5 // pred_check
        _
      $region50: #{relative_mha_forward.1} parent=5 // pred_check_branch
        %286 = sbr.rel (%p283) target = $region52
      $region51: #{relative_mha_forward.1} parent=5 // pred_region
        %s287 = ssub.s32 %s17, 1
        %p288 = scmp.lt.s32.totalorder %s22, 1
        %s289 = scalar_select %p288, %s22, 1
        %s290 = smul.addr %s289, 8
        %s291 = scalar_lea.vmem %s0, %s290
        %p292 = pneg %p43
        %p293 = pneg %p40
        %p294 = scmp.lt.s32.totalorder %s22, 1
        %s295 = scalar_select %p294, %s22, 1
        %s296 = smul.addr %s295, 8
        %s297 = scalar_lea.vmem %s1, %s296
        %p298 = pneg %p69
        %p299 = pneg %p66
        %p300 = scmp.lt.s32.totalorder %s22, 1
        %s301 = scalar_select %p300, %s22, 1
        %s302 = smul.addr %s301, 8
        %s303 = scalar_lea.vmem %s2, %s302
        %p304 = pneg %p95
        %p305 = pneg %p92
        %p306 = pneg %p116
        %p307 = pneg %p113
        %p308 = pneg %p137
        %p309 = pneg %p134
        %p310 = pneg %p158
        %p311 = pneg %p155
        %p312 = pneg %p179
        %p313 = pneg %p176
        %p314 = pneg %p200
        %p315 = pneg %p197
        %p316 = pneg %p226
        %p317 = pneg %p223
        %s318 = sand.u32 %s213, 1
        %s319 = scalar_lea.sflag [#allocation3], %s318
        %s320 = sand.u32 %s213, 1
        %s321 = smul.addr %s320, 8
        %s322 = scalar_lea.vmem [#allocation2], %s321
        %p323 = scmp.lt.s32.totalorder %s22, 1
        %s324 = scalar_select %p323, %s22, 1
        %s325 = smul.addr %s324, 8
        %s326 = scalar_lea.vmem %s0, %s325
        %p327 = scmp.lt.s32.totalorder %s22, 1
        %s328 = scalar_select %p327, %s22, 1
        %s329 = smul.addr %s328, 8
        %s330 = scalar_lea.vmem %s1, %s329
        %p331 = scmp.lt.s32.totalorder %s22, 1
        %s332 = scalar_select %p331, %s22, 1
        %s333 = smul.addr %s332, 8
        %s334 = scalar_lea.vmem %s2, %s333
        %v335 = vld [vmem:[%s326] sm:$0xff]
        %v336 = vld [vmem:[%s3] sm:$0xff]
        %v337 = vld [vmem:[%s3 + $0x8] sm:$0xff]
        %v338 = vld [vmem:[%s3 + $0x10] sm:$0xff]
        %v339 = vld [vmem:[%s3 + $0x18] sm:$0xff]
        %v340 = vld [vmem:[%s3 + $0x20] sm:$0xff]
        %v341 = vld [vmem:[%s3 + $0x28] sm:$0xff]
        %v342 = vld [vmem:[%s3 + $0x30] sm:$0xff]
        %v343 = vld [vmem:[%s3 + $0x38] sm:$0xff]
        %v344 = vld [vmem:[%s3 + $0x40] sm:$0xff]
        %v345 = vld [vmem:[%s3 + $0x48] sm:$0xff]
        %v346 = vld [vmem:[%s3 + $0x50] sm:$0xff]
        %v347 = vld [vmem:[%s3 + $0x58] sm:$0xff]
        %v348 = vld [vmem:[%s3 + $0x60] sm:$0xff]
        %v349 = vld [vmem:[%s3 + $0x68] sm:$0xff]
        %v350 = vld [vmem:[%s3 + $0x70] sm:$0xff]
        %v351 = vld [vmem:[%s3 + $0x78] sm:$0xff]
        %v352 = vld [vmem:[%s4] sm:$0xf]
        %v355 = vunpack.c.l.s4 1966171168
        %v356 = vunpack.c.0.s8 %v355
        %v357 = vlaneseq
        %v358 = vshrl.u32 %v357, 7
        %v359 = vsub.s32 %v356, %v358
        %v360 = vrot.slane %v352, %v359
        %v361 = vcombine.high %v360, %v360
        %v363 = vunpack.c.l.s4 1966171168
        %v364 = vunpack.c.0.s8 %v363
        %v365 = vlaneseq
        %v366 = vshrl.u32 %v365, 7
        %v367 = vsub.s32 %v364, %v366
        %v368 = vrot.slane %v360, %v367
        %v370 = vunpack.c.l.s4 1966171168
        %v371 = vunpack.c.0.s8 %v370
        %v372 = vlaneseq
        %v373 = vshrl.u32 %v372, 7
        %v374 = vsub.s32 %v371, %v373
        %v375 = vrot.slane %v361, %v374
        %v376 = vcombine.high %v368, %v368
        %v377 = vcombine.high %v375, %v375
        %v378 = vlaneseq
        %v379 = vshrl.u32 %v378, 7
        %v380 = vsub.s32 0, %v379
        %v381 = vrot.slane %v368, %v380
        %v382 = vlaneseq
        %v383 = vshrl.u32 %v382, 7
        %v384 = vsub.s32 0, %v383
        %v385 = vrot.slane %v375, %v384
        %v386 = vlaneseq
        %v387 = vshrl.u32 %v386, 7
        %v388 = vsub.s32 0, %v387
        %v389 = vrot.slane %v376, %v388
        %v390 = vlaneseq
        %v391 = vshrl.u32 %v390, 7
        %v392 = vsub.s32 0, %v391
        %v393 = vrot.slane %v377, %v392
        %vm398 = vcmask 261120
        %v400 = vsel %vm398, %v335, 0
        %402 = vmatprep.subr.mxu0 0.0
        %403 = vmatpush1.msra.mxu0 %v336
        %404 = vmatprep.subr.mxu0 0.0
        %405 = vmatpush1.msra.mxu0 %v337
        %406 = vmatprep.subr.mxu0 0.0
        %407 = vmatpush1.msra.mxu0 %v338
        %408 = vmatprep.subr.mxu0 0.0
        %409 = vmatpush1.msra.mxu0 %v339
        %410 = vmatprep.subr.mxu0 0.0
        %411 = vmatpush1.msra.mxu0 0.0
        %412 = vmatprep.subr.mxu0 0.0
        %413 = vmatpush1.msra.mxu0 0.0
        %414 = vmatprep.subr.mxu0 0.0
        %415 = vmatpush1.msra.mxu0 0.0
        %416 = vmatprep.subr.mxu0 0.0
        %417 = vmatpush1.msra.mxu0 0.0
        %418 = vmatprep.subr.mxu0 0.0
        %419 = vmatpush1.msra.mxu0 0.0
        %420 = vmatprep.subr.mxu0 0.0
        %421 = vmatpush1.msra.mxu0 0.0
        %422 = vmatprep.subr.mxu0 0.0
        %423 = vmatpush1.msra.mxu0 0.0
        %424 = vmatprep.subr.mxu0 0.0
        %425 = vmatpush1.msra.mxu0 0.0
        %426 = vmatprep.subr.mxu0 0.0
        %427 = vmatpush1.msra.mxu0 0.0
        %428 = vmatprep.subr.mxu0 0.0
        %429 = vmatpush1.msra.mxu0 0.0
        %430 = vmatprep.subr.mxu0 0.0
        %431 = vmatpush1.msra.mxu0 0.0
        %432 = vmatprep.subr.mxu0 0.0
        %433 = vmatpush1.msra.mxu0 0.0
        %434 = vmatprep.subr.mxu0 0.0
        %435 = vmatpush1.msra.mxu0 0.0
        %436 = vmatprep.subr.mxu0 0.0
        %437 = vmatpush1.msra.mxu0 0.0
        %438 = vmatprep.subr.mxu0 0.0
        %439 = vmatpush1.msra.mxu0 0.0
        %440 = vmatprep.subr.mxu0 0.0
        %441 = vmatpush1.msra.mxu0 0.0
        %442 = vmatprep.subr.mxu0 0.0
        %443 = vmatpush1.msra.mxu0 0.0
        %444 = vmatprep.subr.mxu0 0.0
        %445 = vmatpush1.msra.mxu0 0.0
        %446 = vmatprep.subr.mxu0 0.0
        %447 = vmatpush1.msra.mxu0 0.0
        %448 = vmatprep.subr.mxu0 0.0
        %449 = vmatpush1.msra.mxu0 0.0
        %450 = vmatprep.subr.mxu0 0.0
        %451 = vmatpush1.msra.mxu0 0.0
        %452 = vmatprep.subr.mxu0 0.0
        %453 = vmatpush1.msra.mxu0 0.0
        %454 = vmatprep.subr.mxu0 0.0
        %455 = vmatpush1.msra.mxu0 0.0
        %456 = vmatprep.subr.mxu0 0.0
        %457 = vmatpush1.msra.mxu0 0.0
        %458 = vmatprep.subr.mxu0 0.0
        %459 = vmatpush1.msra.mxu0 0.0
        %460 = vmatprep.subr.mxu0 0.0
        %461 = vmatpush1.msra.mxu0 0.0
        %462 = vmatprep.subr.mxu0 0.0
        %463 = vmatpush1.msra.mxu0 0.0
        %464 = vmatprep.subr.mxu0 0.0
        %465 = vmatpush1.msra.mxu0 0.0
        %466 = vmatprep.mubr.f32.mxu0 0.0
        %467 = vmatmul.mubr.f32.gmra.mrb[0].mxu0 %v400
        %v468 = vpop.f32.mrb[0].mxu0
        %v469 = vadd.f32 %v381, %v468
        %v470 = vpop.f32.mrb[0].mxu0
        %471 = vdwg.mxu0
        %472 = vmatprep.subr.mxu0 0.0
        %473 = vmatpush1.msra.mxu0 %v340
        %474 = vmatprep.subr.mxu0 0.0
        %475 = vmatpush1.msra.mxu0 %v341
        %476 = vmatprep.subr.mxu0 0.0
        %477 = vmatpush1.msra.mxu0 %v342
        %478 = vmatprep.subr.mxu0 0.0
        %479 = vmatpush1.msra.mxu0 %v343
        %480 = vmatprep.subr.mxu0 0.0
        %481 = vmatpush1.msra.mxu0 0.0
        %482 = vmatprep.subr.mxu0 0.0
        %483 = vmatpush1.msra.mxu0 0.0
        %484 = vmatprep.subr.mxu0 0.0
        %485 = vmatpush1.msra.mxu0 0.0
        %486 = vmatprep.subr.mxu0 0.0
        %487 = vmatpush1.msra.mxu0 0.0
        %488 = vmatprep.subr.mxu0 0.0
        %489 = vmatpush1.msra.mxu0 0.0
        %490 = vmatprep.subr.mxu0 0.0
        %491 = vmatpush1.msra.mxu0 0.0
        %492 = vmatprep.subr.mxu0 0.0
        %493 = vmatpush1.msra.mxu0 0.0
        %494 = vmatprep.subr.mxu0 0.0
        %495 = vmatpush1.msra.mxu0 0.0
        %496 = vmatprep.subr.mxu0 0.0
        %497 = vmatpush1.msra.mxu0 0.0
        %498 = vmatprep.subr.mxu0 0.0
        %499 = vmatpush1.msra.mxu0 0.0
        %500 = vmatprep.subr.mxu0 0.0
        %501 = vmatpush1.msra.mxu0 0.0
        %502 = vmatprep.subr.mxu0 0.0
        %503 = vmatpush1.msra.mxu0 0.0
        %504 = vmatprep.subr.mxu0 0.0
        %505 = vmatpush1.msra.mxu0 0.0
        %506 = vmatprep.subr.mxu0 0.0
        %507 = vmatpush1.msra.mxu0 0.0
        %508 = vmatprep.subr.mxu0 0.0
        %509 = vmatpush1.msra.mxu0 0.0
        %510 = vmatprep.subr.mxu0 0.0
        %511 = vmatpush1.msra.mxu0 0.0
        %512 = vmatprep.subr.mxu0 0.0
        %513 = vmatpush1.msra.mxu0 0.0
        %514 = vmatprep.subr.mxu0 0.0
        %515 = vmatpush1.msra.mxu0 0.0
        %516 = vmatprep.subr.mxu0 0.0
        %517 = vmatpush1.msra.mxu0 0.0
        %518 = vmatprep.subr.mxu0 0.0
        %519 = vmatpush1.msra.mxu0 0.0
        %520 = vmatprep.subr.mxu0 0.0
        %521 = vmatpush1.msra.mxu0 0.0
        %522 = vmatprep.subr.mxu0 0.0
        %523 = vmatpush1.msra.mxu0 0.0
        %524 = vmatprep.subr.mxu0 0.0
        %525 = vmatpush1.msra.mxu0 0.0
        %526 = vmatprep.subr.mxu0 0.0
        %527 = vmatpush1.msra.mxu0 0.0
        %528 = vmatprep.subr.mxu0 0.0
        %529 = vmatpush1.msra.mxu0 0.0
        %530 = vmatprep.subr.mxu0 0.0
        %531 = vmatpush1.msra.mxu0 0.0
        %532 = vmatprep.subr.mxu0 0.0
        %533 = vmatpush1.msra.mxu0 0.0
        %534 = vmatprep.subr.mxu0 0.0
        %535 = vmatpush1.msra.mxu0 0.0
        %536 = vmatprep.mubr.f32.mxu0 0.0
        %537 = vmatmul.mubr.f32.gmra.mrb[0].mxu0 %v400
        %v538 = vpop.f32.mrb[0].mxu0
        %v539 = vadd.f32 %v385, %v538
        %v540 = vpop.f32.mrb[0].mxu0
        %541 = vdwg.mxu0
        %542 = vmatprep.subr.mxu0 0.0
        %543 = vmatpush1.msra.mxu0 %v344
        %544 = vmatprep.subr.mxu0 0.0
        %545 = vmatpush1.msra.mxu0 %v345
        %546 = vmatprep.subr.mxu0 0.0
        %547 = vmatpush1.msra.mxu0 %v346
        %548 = vmatprep.subr.mxu0 0.0
        %549 = vmatpush1.msra.mxu0 %v347
        %550 = vmatprep.subr.mxu0 0.0
        %551 = vmatpush1.msra.mxu0 0.0
        %552 = vmatprep.subr.mxu0 0.0
        %553 = vmatpush1.msra.mxu0 0.0
        %554 = vmatprep.subr.mxu0 0.0
        %555 = vmatpush1.msra.mxu0 0.0
        %556 = vmatprep.subr.mxu0 0.0
        %557 = vmatpush1.msra.mxu0 0.0
        %558 = vmatprep.subr.mxu0 0.0
        %559 = vmatpush1.msra.mxu0 0.0
        %560 = vmatprep.subr.mxu0 0.0
        %561 = vmatpush1.msra.mxu0 0.0
        %562 = vmatprep.subr.mxu0 0.0
        %563 = vmatpush1.msra.mxu0 0.0
        %564 = vmatprep.subr.mxu0 0.0
        %565 = vmatpush1.msra.mxu0 0.0
        %566 = vmatprep.subr.mxu0 0.0
        %567 = vmatpush1.msra.mxu0 0.0
        %568 = vmatprep.subr.mxu0 0.0
        %569 = vmatpush1.msra.mxu0 0.0
        %570 = vmatprep.subr.mxu0 0.0
        %571 = vmatpush1.msra.mxu0 0.0
        %572 = vmatprep.subr.mxu0 0.0
        %573 = vmatpush1.msra.mxu0 0.0
        %574 = vmatprep.subr.mxu0 0.0
        %575 = vmatpush1.msra.mxu0 0.0
        %576 = vmatprep.subr.mxu0 0.0
        %577 = vmatpush1.msra.mxu0 0.0
        %578 = vmatprep.subr.mxu0 0.0
        %579 = vmatpush1.msra.mxu0 0.0
        %580 = vmatprep.subr.mxu0 0.0
        %581 = vmatpush1.msra.mxu0 0.0
        %582 = vmatprep.subr.mxu0 0.0
        %583 = vmatpush1.msra.mxu0 0.0
        %584 = vmatprep.subr.mxu0 0.0
        %585 = vmatpush1.msra.mxu0 0.0
        %586 = vmatprep.subr.mxu0 0.0
        %587 = vmatpush1.msra.mxu0 0.0
        %588 = vmatprep.subr.mxu0 0.0
        %589 = vmatpush1.msra.mxu0 0.0
        %590 = vmatprep.subr.mxu0 0.0
        %591 = vmatpush1.msra.mxu0 0.0
        %592 = vmatprep.subr.mxu0 0.0
        %593 = vmatpush1.msra.mxu0 0.0
        %594 = vmatprep.subr.mxu0 0.0
        %595 = vmatpush1.msra.mxu0 0.0
        %596 = vmatprep.subr.mxu0 0.0
        %597 = vmatpush1.msra.mxu0 0.0
        %598 = vmatprep.subr.mxu0 0.0
        %599 = vmatpush1.msra.mxu0 0.0
        %600 = vmatprep.subr.mxu0 0.0
        %601 = vmatpush1.msra.mxu0 0.0
        %602 = vmatprep.subr.mxu0 0.0
        %603 = vmatpush1.msra.mxu0 0.0
        %604 = vmatprep.subr.mxu0 0.0
        %605 = vmatpush1.msra.mxu0 0.0
        %606 = vmatprep.mubr.f32.mxu0 0.0
        %607 = vmatmul.mubr.f32.gmra.mrb[0].mxu0 %v400
        %v608 = vpop.f32.mrb[0].mxu0
        %v609 = vadd.f32 %v389, %v608
        %v610 = vpop.f32.mrb[0].mxu0
        %611 = vdwg.mxu0
        %612 = vmatprep.subr.mxu0 0.0
        %613 = vmatpush1.msra.mxu0 %v348
        %614 = vmatprep.subr.mxu0 0.0
        %615 = vmatpush1.msra.mxu0 %v349
        %616 = vmatprep.subr.mxu0 0.0
        %617 = vmatpush1.msra.mxu0 %v350
        %618 = vmatprep.subr.mxu0 0.0
        %619 = vmatpush1.msra.mxu0 %v351
        %620 = vmatprep.subr.mxu0 0.0
        %621 = vmatpush1.msra.mxu0 0.0
        %622 = vmatprep.subr.mxu0 0.0
        %623 = vmatpush1.msra.mxu0 0.0
        %624 = vmatprep.subr.mxu0 0.0
        %625 = vmatpush1.msra.mxu0 0.0
        %626 = vmatprep.subr.mxu0 0.0
        %627 = vmatpush1.msra.mxu0 0.0
        %628 = vmatprep.subr.mxu0 0.0
        %629 = vmatpush1.msra.mxu0 0.0
        %630 = vmatprep.subr.mxu0 0.0
        %631 = vmatpush1.msra.mxu0 0.0
        %632 = vmatprep.subr.mxu0 0.0
        %633 = vmatpush1.msra.mxu0 0.0
        %634 = vmatprep.subr.mxu0 0.0
        %635 = vmatpush1.msra.mxu0 0.0
        %636 = vmatprep.subr.mxu0 0.0
        %637 = vmatpush1.msra.mxu0 0.0
        %638 = vmatprep.subr.mxu0 0.0
        %639 = vmatpush1.msra.mxu0 0.0
        %640 = vmatprep.subr.mxu0 0.0
        %641 = vmatpush1.msra.mxu0 0.0
        %642 = vmatprep.subr.mxu0 0.0
        %643 = vmatpush1.msra.mxu0 0.0
        %644 = vmatprep.subr.mxu0 0.0
        %645 = vmatpush1.msra.mxu0 0.0
        %646 = vmatprep.subr.mxu0 0.0
        %647 = vmatpush1.msra.mxu0 0.0
        %648 = vmatprep.subr.mxu0 0.0
        %649 = vmatpush1.msra.mxu0 0.0
        %650 = vmatprep.subr.mxu0 0.0
        %651 = vmatpush1.msra.mxu0 0.0
        %652 = vmatprep.subr.mxu0 0.0
        %653 = vmatpush1.msra.mxu0 0.0
        %654 = vmatprep.subr.mxu0 0.0
        %655 = vmatpush1.msra.mxu0 0.0
        %656 = vmatprep.subr.mxu0 0.0
        %657 = vmatpush1.msra.mxu0 0.0
        %658 = vmatprep.subr.mxu0 0.0
        %659 = vmatpush1.msra.mxu0 0.0
        %660 = vmatprep.subr.mxu0 0.0
        %661 = vmatpush1.msra.mxu0 0.0
        %662 = vmatprep.subr.mxu0 0.0
        %663 = vmatpush1.msra.mxu0 0.0
        %664 = vmatprep.subr.mxu0 0.0
        %665 = vmatpush1.msra.mxu0 0.0
        %666 = vmatprep.subr.mxu0 0.0
        %667 = vmatpush1.msra.mxu0 0.0
        %668 = vmatprep.subr.mxu0 0.0
        %669 = vmatpush1.msra.mxu0 0.0
        %670 = vmatprep.subr.mxu0 0.0
        %671 = vmatpush1.msra.mxu0 0.0
        %672 = vmatprep.subr.mxu0 0.0
        %673 = vmatpush1.msra.mxu0 0.0
        %674 = vmatprep.subr.mxu0 0.0
        %675 = vmatpush1.msra.mxu0 0.0
        %676 = vmatprep.mubr.f32.mxu0 0.0
        %677 = vmatmul.mubr.f32.gmra.mrb[0].mxu0 %v400
        %v678 = vpop.f32.mrb[0].mxu0
        %v679 = vadd.f32 %v393, %v678
        %v680 = vpop.f32.mrb[0].mxu0
        %681 = vdwg.mxu0
        %v682 = vld [vmem:[%s330] sm:$0xff]
        %s683 = scalar_lea.vmem %s3, 128
        %v684 = vld [vmem:[%s683] sm:$0xff]
        %v685 = vld [vmem:[%s683 + $0x8] sm:$0xff]
        %v686 = vld [vmem:[%s683 + $0x10] sm:$0xff]
        %v687 = vld [vmem:[%s683 + $0x18] sm:$0xff]
        %v688 = vld [vmem:[%s683 + $0x20] sm:$0xff]
        %v689 = vld [vmem:[%s683 + $0x28] sm:$0xff]
        %v690 = vld [vmem:[%s683 + $0x30] sm:$0xff]
        %v691 = vld [vmem:[%s683 + $0x38] sm:$0xff]
        %v692 = vld [vmem:[%s683 + $0x40] sm:$0xff]
        %v693 = vld [vmem:[%s683 + $0x48] sm:$0xff]
        %v694 = vld [vmem:[%s683 + $0x50] sm:$0xff]
        %v695 = vld [vmem:[%s683 + $0x58] sm:$0xff]
        %v696 = vld [vmem:[%s683 + $0x60] sm:$0xff]
        %v697 = vld [vmem:[%s683 + $0x68] sm:$0xff]
        %v698 = vld [vmem:[%s683 + $0x70] sm:$0xff]
        %v699 = vld [vmem:[%s683 + $0x78] sm:$0xff]
        %s700 = scalar_lea.vmem %s4, 4
        %v701 = vld [vmem:[%s700] sm:$0xf]
        %v704 = vunpack.c.l.s4 1966171168
        %v705 = vunpack.c.0.s8 %v704
        %v706 = vlaneseq
        %v707 = vshrl.u32 %v706, 7
        %v708 = vsub.s32 %v705, %v707
        %v709 = vrot.slane %v701, %v708
        %v710 = vcombine.high %v709, %v709
        %v712 = vunpack.c.l.s4 1966171168
        %v713 = vunpack.c.0.s8 %v712
        %v714 = vlaneseq
        %v715 = vshrl.u32 %v714, 7
        %v716 = vsub.s32 %v713, %v715
        %v717 = vrot.slane %v709, %v716
        %v719 = vunpack.c.l.s4 1966171168
        %v720 = vunpack.c.0.s8 %v719
        %v721 = vlaneseq
        %v722 = vshrl.u32 %v721, 7
        %v723 = vsub.s32 %v720, %v722
        %v724 = vrot.slane %v710, %v723
        %v725 = vcombine.high %v717, %v717
        %v726 = vcombine.high %v724, %v724
        %v727 = vlaneseq
        %v728 = vshrl.u32 %v727, 7
        %v729 = vsub.s32 0, %v728
        %v730 = vrot.slane %v717, %v729
        %v731 = vlaneseq
        %v732 = vshrl.u32 %v731, 7
        %v733 = vsub.s32 0, %v732
        %v734 = vrot.slane %v724, %v733
        %v735 = vlaneseq
        %v736 = vshrl.u32 %v735, 7
        %v737 = vsub.s32 0, %v736
        %v738 = vrot.slane %v725, %v737
        %v739 = vlaneseq
        %v740 = vshrl.u32 %v739, 7
        %v741 = vsub.s32 0, %v740
        %v742 = vrot.slane %v726, %v741
        %v748 = vsel %vm398, %v682, 0
        %750 = vmatprep.subr.mxu0 0.0
        %751 = vmatpush1.msra.mxu0 %v684
        %752 = vmatprep.subr.mxu0 0.0
        %753 = vmatpush1.msra.mxu0 %v685
        %754 = vmatprep.subr.mxu0 0.0
        %755 = vmatpush1.msra.mxu0 %v686
        %756 = vmatprep.subr.mxu0 0.0
        %757 = vmatpush1.msra.mxu0 %v687
        %758 = vmatprep.subr.mxu0 0.0
        %759 = vmatpush1.msra.mxu0 0.0
        %760 = vmatprep.subr.mxu0 0.0
        %761 = vmatpush1.msra.mxu0 0.0
        %762 = vmatprep.subr.mxu0 0.0
        %763 = vmatpush1.msra.mxu0 0.0
        %764 = vmatprep.subr.mxu0 0.0
        %765 = vmatpush1.msra.mxu0 0.0
        %766 = vmatprep.subr.mxu0 0.0
        %767 = vmatpush1.msra.mxu0 0.0
        %768 = vmatprep.subr.mxu0 0.0
        %769 = vmatpush1.msra.mxu0 0.0
        %770 = vmatprep.subr.mxu0 0.0
        %771 = vmatpush1.msra.mxu0 0.0
        %772 = vmatprep.subr.mxu0 0.0
        %773 = vmatpush1.msra.mxu0 0.0
        %774 = vmatprep.subr.mxu0 0.0
        %775 = vmatpush1.msra.mxu0 0.0
        %776 = vmatprep.subr.mxu0 0.0
        %777 = vmatpush1.msra.mxu0 0.0
        %778 = vmatprep.subr.mxu0 0.0
        %779 = vmatpush1.msra.mxu0 0.0
        %780 = vmatprep.subr.mxu0 0.0
        %781 = vmatpush1.msra.mxu0 0.0
        %782 = vmatprep.subr.mxu0 0.0
        %783 = vmatpush1.msra.mxu0 0.0
        %784 = vmatprep.subr.mxu0 0.0
        %785 = vmatpush1.msra.mxu0 0.0
        %786 = vmatprep.subr.mxu0 0.0
        %787 = vmatpush1.msra.mxu0 0.0
        %788 = vmatprep.subr.mxu0 0.0
        %789 = vmatpush1.msra.mxu0 0.0
        %790 = vmatprep.subr.mxu0 0.0
        %791 = vmatpush1.msra.mxu0 0.0
        %792 = vmatprep.subr.mxu0 0.0
        %793 = vmatpush1.msra.mxu0 0.0
        %794 = vmatprep.subr.mxu0 0.0
        %795 = vmatpush1.msra.mxu0 0.0
        %796 = vmatprep.subr.mxu0 0.0
        %797 = vmatpush1.msra.mxu0 0.0
        %798 = vmatprep.subr.mxu0 0.0
        %799 = vmatpush1.msra.mxu0 0.0
        %800 = vmatprep.subr.mxu0 0.0
        %801 = vmatpush1.msra.mxu0 0.0
        %802 = vmatprep.subr.mxu0 0.0
        %803 = vmatpush1.msra.mxu0 0.0
        %804 = vmatprep.subr.mxu0 0.0
        %805 = vmatpush1.msra.mxu0 0.0
        %806 = vmatprep.subr.mxu0 0.0
        %807 = vmatpush1.msra.mxu0 0.0
        %808 = vmatprep.subr.mxu0 0.0
        %809 = vmatpush1.msra.mxu0 0.0
        %810 = vmatprep.subr.mxu0 0.0
        %811 = vmatpush1.msra.mxu0 0.0
        %812 = vmatprep.subr.mxu0 0.0
        %813 = vmatpush1.msra.mxu0 0.0
        %814 = vmatprep.mubr.f32.mxu0 0.0
        %815 = vmatmul.mubr.f32.gmra.mrb[0].mxu0 %v748
        %v816 = vpop.f32.mrb[0].mxu0
        %v817 = vadd.f32 %v730, %v816
        %v818 = vpop.f32.mrb[0].mxu0
        %819 = vdwg.mxu0
        %820 = vmatprep.subr.mxu0 0.0
        %821 = vmatpush1.msra.mxu0 %v688
        %822 = vmatprep.subr.mxu0 0.0
        %823 = vmatpush1.msra.mxu0 %v689
        %824 = vmatprep.subr.mxu0 0.0
        %825 = vmatpush1.msra.mxu0 %v690
        %826 = vmatprep.subr.mxu0 0.0
        %827 = vmatpush1.msra.mxu0 %v691
        %828 = vmatprep.subr.mxu0 0.0
        %829 = vmatpush1.msra.mxu0 0.0
        %830 = vmatprep.subr.mxu0 0.0
        %831 = vmatpush1.msra.mxu0 0.0
        %832 = vmatprep.subr.mxu0 0.0
        %833 = vmatpush1.msra.mxu0 0.0
        %834 = vmatprep.subr.mxu0 0.0
        %835 = vmatpush1.msra.mxu0 0.0
        %836 = vmatprep.subr.mxu0 0.0
        %837 = vmatpush1.msra.mxu0 0.0
        %838 = vmatprep.subr.mxu0 0.0
        %839 = vmatpush1.msra.mxu0 0.0
        %840 = vmatprep.subr.mxu0 0.0
        %841 = vmatpush1.msra.mxu0 0.0
        %842 = vmatprep.subr.mxu0 0.0
        %843 = vmatpush1.msra.mxu0 0.0
        %844 = vmatprep.subr.mxu0 0.0
        %845 = vmatpush1.msra.mxu0 0.0
        %846 = vmatprep.subr.mxu0 0.0
        %847 = vmatpush1.msra.mxu0 0.0
        %848 = vmatprep.subr.mxu0 0.0
        %849 = vmatpush1.msra.mxu0 0.0
        %850 = vmatprep.subr.mxu0 0.0
        %851 = vmatpush1.msra.mxu0 0.0
        %852 = vmatprep.subr.mxu0 0.0
        %853 = vmatpush1.msra.mxu0 0.0
        %854 = vmatprep.subr.mxu0 0.0
        %855 = vmatpush1.msra.mxu0 0.0
        %856 = vmatprep.subr.mxu0 0.0
        %857 = vmatpush1.msra.mxu0 0.0
        %858 = vmatprep.subr.mxu0 0.0
        %859 = vmatpush1.msra.mxu0 0.0
        %860 = vmatprep.subr.mxu0 0.0
        %861 = vmatpush1.msra.mxu0 0.0
        %862 = vmatprep.subr.mxu0 0.0
        %863 = vmatpush1.msra.mxu0 0.0
        %864 = vmatprep.subr.mxu0 0.0
        %865 = vmatpush1.msra.mxu0 0.0
        %866 = vmatprep.subr.mxu0 0.0
        %867 = vmatpush1.msra.mxu0 0.0
        %868 = vmatprep.subr.mxu0 0.0
        %869 = vmatpush1.msra.mxu0 0.0
        %870 = vmatprep.subr.mxu0 0.0
        %871 = vmatpush1.msra.mxu0 0.0
        %872 = vmatprep.subr.mxu0 0.0
        %873 = vmatpush1.msra.mxu0 0.0
        %874 = vmatprep.subr.mxu0 0.0
        %875 = vmatpush1.msra.mxu0 0.0
        %876 = vmatprep.subr.mxu0 0.0
        %877 = vmatpush1.msra.mxu0 0.0
        %878 = vmatprep.subr.mxu0 0.0
        %879 = vmatpush1.msra.mxu0 0.0
        %880 = vmatprep.subr.mxu0 0.0
        %881 = vmatpush1.msra.mxu0 0.0
        %882 = vmatprep.subr.mxu0 0.0
        %883 = vmatpush1.msra.mxu0 0.0
        %884 = vmatprep.mubr.f32.mxu0 0.0
        %885 = vmatmul.mubr.f32.gmra.mrb[0].mxu0 %v748
        %v886 = vpop.f32.mrb[0].mxu0
        %v887 = vadd.f32 %v734, %v886
        %v888 = vpop.f32.mrb[0].mxu0
        %889 = vdwg.mxu0
        %890 = vmatprep.subr.mxu0 0.0
        %891 = vmatpush1.msra.mxu0 %v692
        %892 = vmatprep.subr.mxu0 0.0
        %893 = vmatpush1.msra.mxu0 %v693
        %894 = vmatprep.subr.mxu0 0.0
        %895 = vmatpush1.msra.mxu0 %v694
        %896 = vmatprep.subr.mxu0 0.0
        %897 = vmatpush1.msra.mxu0 %v695
        %898 = vmatprep.subr.mxu0 0.0
        %899 = vmatpush1.msra.mxu0 0.0
        %900 = vmatprep.subr.mxu0 0.0
        %901 = vmatpush1.msra.mxu0 0.0
        %902 = vmatprep.subr.mxu0 0.0
        %903 = vmatpush1.msra.mxu0 0.0
        %904 = vmatprep.subr.mxu0 0.0
        %905 = vmatpush1.msra.mxu0 0.0
        %906 = vmatprep.subr.mxu0 0.0
        %907 = vmatpush1.msra.mxu0 0.0
        %908 = vmatprep.subr.mxu0 0.0
        %909 = vmatpush1.msra.mxu0 0.0
        %910 = vmatprep.subr.mxu0 0.0
        %911 = vmatpush1.msra.mxu0 0.0
        %912 = vmatprep.subr.mxu0 0.0
        %913 = vmatpush1.msra.mxu0 0.0
        %914 = vmatprep.subr.mxu0 0.0
        %915 = vmatpush1.msra.mxu0 0.0
        %916 = vmatprep.subr.mxu0 0.0
        %917 = vmatpush1.msra.mxu0 0.0
        %918 = vmatprep.subr.mxu0 0.0
        %919 = vmatpush1.msra.mxu0 0.0
        %920 = vmatprep.subr.mxu0 0.0
        %921 = vmatpush1.msra.mxu0 0.0
        %922 = vmatprep.subr.mxu0 0.0
        %923 = vmatpush1.msra.mxu0 0.0
        %924 = vmatprep.subr.mxu0 0.0
        %925 = vmatpush1.msra.mxu0 0.0
        %926 = vmatprep.subr.mxu0 0.0
        %927 = vmatpush1.msra.mxu0 0.0
        %928 = vmatprep.subr.mxu0 0.0
        %929 = vmatpush1.msra.mxu0 0.0
        %930 = vmatprep.subr.mxu0 0.0
        %931 = vmatpush1.msra.mxu0 0.0
        %932 = vmatprep.subr.mxu0 0.0
        %933 = vmatpush1.msra.mxu0 0.0
        %934 = vmatprep.subr.mxu0 0.0
        %935 = vmatpush1.msra.mxu0 0.0
        %936 = vmatprep.subr.mxu0 0.0
        %937 = vmatpush1.msra.mxu0 0.0
        %938 = vmatprep.subr.mxu0 0.0
        %939 = vmatpush1.msra.mxu0 0.0
        %940 = vmatprep.subr.mxu0 0.0
        %941 = vmatpush1.msra.mxu0 0.0
        %942 = vmatprep.subr.mxu0 0.0
        %943 = vmatpush1.msra.mxu0 0.0
        %944 = vmatprep.subr.mxu0 0.0
        %945 = vmatpush1.msra.mxu0 0.0
        %946 = vmatprep.subr.mxu0 0.0
        %947 = vmatpush1.msra.mxu0 0.0
        %948 = vmatprep.subr.mxu0 0.0
        %949 = vmatpush1.msra.mxu0 0.0
        %950 = vmatprep.subr.mxu0 0.0
        %951 = vmatpush1.msra.mxu0 0.0
        %952 = vmatprep.subr.mxu0 0.0
        %953 = vmatpush1.msra.mxu0 0.0
        %954 = vmatprep.mubr.f32.mxu0 0.0
        %955 = vmatmul.mubr.f32.gmra.mrb[0].mxu0 %v748
        %v956 = vpop.f32.mrb[0].mxu0
        %v957 = vadd.f32 %v738, %v956
        %v958 = vpop.f32.mrb[0].mxu0
        %959 = vdwg.mxu0
        %960 = vmatprep.subr.mxu0 0.0
        %961 = vmatpush1.msra.mxu0 %v696
        %962 = vmatprep.subr.mxu0 0.0
        %963 = vmatpush1.msra.mxu0 %v697
        %964 = vmatprep.subr.mxu0 0.0
        %965 = vmatpush1.msra.mxu0 %v698
        %966 = vmatprep.subr.mxu0 0.0
        %967 = vmatpush1.msra.mxu0 %v699
        %968 = vmatprep.subr.mxu0 0.0
        %969 = vmatpush1.msra.mxu0 0.0
        %970 = vmatprep.subr.mxu0 0.0
        %971 = vmatpush1.msra.mxu0 0.0
        %972 = vmatprep.subr.mxu0 0.0
        %973 = vmatpush1.msra.mxu0 0.0
        %974 = vmatprep.subr.mxu0 0.0
        %975 = vmatpush1.msra.mxu0 0.0
        %976 = vmatprep.subr.mxu0 0.0
        %977 = vmatpush1.msra.mxu0 0.0
        %978 = vmatprep.subr.mxu0 0.0
        %979 = vmatpush1.msra.mxu0 0.0
        %980 = vmatprep.subr.mxu0 0.0
        %981 = vmatpush1.msra.mxu0 0.0
        %982 = vmatprep.subr.mxu0 0.0
        %983 = vmatpush1.msra.mxu0 0.0
        %984 = vmatprep.subr.mxu0 0.0
        %985 = vmatpush1.msra.mxu0 0.0
        %986 = vmatprep.subr.mxu0 0.0
        %987 = vmatpush1.msra.mxu0 0.0
        %988 = vmatprep.subr.mxu0 0.0
        %989 = vmatpush1.msra.mxu0 0.0
        %990 = vmatprep.subr.mxu0 0.0
        %991 = vmatpush1.msra.mxu0 0.0
        %992 = vmatprep.subr.mxu0 0.0
        %993 = vmatpush1.msra.mxu0 0.0
        %994 = vmatprep.subr.mxu0 0.0
        %995 = vmatpush1.msra.mxu0 0.0
        %996 = vmatprep.subr.mxu0 0.0
        %997 = vmatpush1.msra.mxu0 0.0
        %998 = vmatprep.subr.mxu0 0.0
        %999 = vmatpush1.msra.mxu0 0.0
        %1000 = vmatprep.subr.mxu0 0.0
        %1001 = vmatpush1.msra.mxu0 0.0
        %1002 = vmatprep.subr.mxu0 0.0
        %1003 = vmatpush1.msra.mxu0 0.0
        %1004 = vmatprep.subr.mxu0 0.0
        %1005 = vmatpush1.msra.mxu0 0.0
        %1006 = vmatprep.subr.mxu0 0.0
        %1007 = vmatpush1.msra.mxu0 0.0
        %1008 = vmatprep.subr.mxu0 0.0
        %1009 = vmatpush1.msra.mxu0 0.0
        %1010 = vmatprep.subr.mxu0 0.0
        %1011 = vmatpush1.msra.mxu0 0.0
        %1012 = vmatprep.subr.mxu0 0.0
        %1013 = vmatpush1.msra.mxu0 0.0
        %1014 = vmatprep.subr.mxu0 0.0
        %1015 = vmatpush1.msra.mxu0 0.0
        %1016 = vmatprep.subr.mxu0 0.0
        %1017 = vmatpush1.msra.mxu0 0.0
        %1018 = vmatprep.subr.mxu0 0.0
        %1019 = vmatpush1.msra.mxu0 0.0
        %1020 = vmatprep.subr.mxu0 0.0
        %1021 = vmatpush1.msra.mxu0 0.0
        %1022 = vmatprep.subr.mxu0 0.0
        %1023 = vmatpush1.msra.mxu0 0.0
        %1024 = vmatprep.mubr.f32.mxu0 0.0
        %1025 = vmatmul.mubr.f32.gmra.mrb[0].mxu0 %v748
        %v1026 = vpop.f32.mrb[0].mxu0
        %v1027 = vadd.f32 %v742, %v1026
        %v1028 = vpop.f32.mrb[0].mxu0
        %1029 = vdwg.mxu0
        %v1030 = vld [vmem:[%s334] sm:$0xff]
        %s1031 = scalar_lea.vmem %s3, 256
        %v1032 = vld [vmem:[%s1031] sm:$0xff]
        %v1033 = vld [vmem:[%s1031 + $0x8] sm:$0xff]
        %v1034 = vld [vmem:[%s1031 + $0x10] sm:$0xff]
        %v1035 = vld [vmem:[%s1031 + $0x18] sm:$0xff]
        %v1036 = vld [vmem:[%s1031 + $0x20] sm:$0xff]
        %v1037 = vld [vmem:[%s1031 + $0x28] sm:$0xff]
        %v1038 = vld [vmem:[%s1031 + $0x30] sm:$0xff]
        %v1039 = vld [vmem:[%s1031 + $0x38] sm:$0xff]
        %v1040 = vld [vmem:[%s1031 + $0x40] sm:$0xff]
        %v1041 = vld [vmem:[%s1031 + $0x48] sm:$0xff]
        %v1042 = vld [vmem:[%s1031 + $0x50] sm:$0xff]
        %v1043 = vld [vmem:[%s1031 + $0x58] sm:$0xff]
        %v1044 = vld [vmem:[%s1031 + $0x60] sm:$0xff]
        %v1045 = vld [vmem:[%s1031 + $0x68] sm:$0xff]
        %v1046 = vld [vmem:[%s1031 + $0x70] sm:$0xff]
        %v1047 = vld [vmem:[%s1031 + $0x78] sm:$0xff]
        %s1048 = scalar_lea.vmem %s4, 8
        %v1049 = vld [vmem:[%s1048] sm:$0xf]
        %v1052 = vunpack.c.l.s4 1966171168
        %v1053 = vunpack.c.0.s8 %v1052
        %v1054 = vlaneseq
        %v1055 = vshrl.u32 %v1054, 7
        %v1056 = vsub.s32 %v1053, %v1055
        %v1057 = vrot.slane %v1049, %v1056
        %v1058 = vcombine.high %v1057, %v1057
        %v1060 = vunpack.c.l.s4 1966171168
        %v1061 = vunpack.c.0.s8 %v1060
        %v1062 = vlaneseq
        %v1063 = vshrl.u32 %v1062, 7
        %v1064 = vsub.s32 %v1061, %v1063
        %v1065 = vrot.slane %v1057, %v1064
        %v1067 = vunpack.c.l.s4 1966171168
        %v1068 = vunpack.c.0.s8 %v1067
        %v1069 = vlaneseq
        %v1070 = vshrl.u32 %v1069, 7
        %v1071 = vsub.s32 %v1068, %v1070
        %v1072 = vrot.slane %v1058, %v1071
        %v1073 = vcombine.high %v1065, %v1065
        %v1074 = vcombine.high %v1072, %v1072
        %v1075 = vlaneseq
        %v1076 = vshrl.u32 %v1075, 7
        %v1077 = vsub.s32 0, %v1076
        %v1078 = vrot.slane %v1065, %v1077
        %v1079 = vlaneseq
        %v1080 = vshrl.u32 %v1079, 7
        %v1081 = vsub.s32 0, %v1080
        %v1082 = vrot.slane %v1072, %v1081
        %v1083 = vlaneseq
        %v1084 = vshrl.u32 %v1083, 7
        %v1085 = vsub.s32 0, %v1084
        %v1086 = vrot.slane %v1073, %v1085
        %v1087 = vlaneseq
        %v1088 = vshrl.u32 %v1087, 7
        %v1089 = vsub.s32 0, %v1088
        %v1090 = vrot.slane %v1074, %v1089
        %v1096 = vsel %vm398, %v1030, 0
        %1098 = vmatprep.subr.mxu0 0.0
        %1099 = vmatpush1.msra.mxu0 %v1032
        %1100 = vmatprep.subr.mxu0 0.0
        %1101 = vmatpush1.msra.mxu0 %v1033
        %1102 = vmatprep.subr.mxu0 0.0
        %1103 = vmatpush1.msra.mxu0 %v1034
        %1104 = vmatprep.subr.mxu0 0.0
        %1105 = vmatpush1.msra.mxu0 %v1035
        %1106 = vmatprep.subr.mxu0 0.0
        %1107 = vmatpush1.msra.mxu0 0.0
        %1108 = vmatprep.subr.mxu0 0.0
        %1109 = vmatpush1.msra.mxu0 0.0
        %1110 = vmatprep.subr.mxu0 0.0
        %1111 = vmatpush1.msra.mxu0 0.0
        %1112 = vmatprep.subr.mxu0 0.0
        %1113 = vmatpush1.msra.mxu0 0.0
        %1114 = vmatprep.subr.mxu0 0.0
        %1115 = vmatpush1.msra.mxu0 0.0
        %1116 = vmatprep.subr.mxu0 0.0
        %1117 = vmatpush1.msra.mxu0 0.0
        %1118 = vmatprep.subr.mxu0 0.0
        %1119 = vmatpush1.msra.mxu0 0.0
        %1120 = vmatprep.subr.mxu0 0.0
        %1121 = vmatpush1.msra.mxu0 0.0
        %1122 = vmatprep.subr.mxu0 0.0
        %1123 = vmatpush1.msra.mxu0 0.0
        %1124 = vmatprep.subr.mxu0 0.0
        %1125 = vmatpush1.msra.mxu0 0.0
        %1126 = vmatprep.subr.mxu0 0.0
        %1127 = vmatpush1.msra.mxu0 0.0
        %1128 = vmatprep.subr.mxu0 0.0
        %1129 = vmatpush1.msra.mxu0 0.0
        %1130 = vmatprep.subr.mxu0 0.0
        %1131 = vmatpush1.msra.mxu0 0.0
        %1132 = vmatprep.subr.mxu0 0.0
        %1133 = vmatpush1.msra.mxu0 0.0
        %1134 = vmatprep.subr.mxu0 0.0
        %1135 = vmatpush1.msra.mxu0 0.0
        %1136 = vmatprep.subr.mxu0 0.0
        %1137 = vmatpush1.msra.mxu0 0.0
        %1138 = vmatprep.subr.mxu0 0.0
        %1139 = vmatpush1.msra.mxu0 0.0
        %1140 = vmatprep.subr.mxu0 0.0
        %1141 = vmatpush1.msra.mxu0 0.0
        %1142 = vmatprep.subr.mxu0 0.0
        %1143 = vmatpush1.msra.mxu0 0.0
        %1144 = vmatprep.subr.mxu0 0.0
        %1145 = vmatpush1.msra.mxu0 0.0
        %1146 = vmatprep.subr.mxu0 0.0
        %1147 = vmatpush1.msra.mxu0 0.0
        %1148 = vmatprep.subr.mxu0 0.0
        %1149 = vmatpush1.msra.mxu0 0.0
        %1150 = vmatprep.subr.mxu0 0.0
        %1151 = vmatpush1.msra.mxu0 0.0
        %1152 = vmatprep.subr.mxu0 0.0
        %1153 = vmatpush1.msra.mxu0 0.0
        %1154 = vmatprep.subr.mxu0 0.0
        %1155 = vmatpush1.msra.mxu0 0.0
        %1156 = vmatprep.subr.mxu0 0.0
        %1157 = vmatpush1.msra.mxu0 0.0
        %1158 = vmatprep.subr.mxu0 0.0
        %1159 = vmatpush1.msra.mxu0 0.0
        %1160 = vmatprep.subr.mxu0 0.0
        %1161 = vmatpush1.msra.mxu0 0.0
        %1162 = vmatprep.mubr.f32.mxu0 0.0
        %1163 = vmatmul.mubr.f32.gmra.mrb[0].mxu0 %v1096
        %v1164 = vpop.f32.mrb[0].mxu0
        %v1165 = vadd.f32 %v1078, %v1164
        %v1166 = vpop.f32.mrb[0].mxu0
        %1167 = vdwg.mxu0
        %1168 = vmatprep.subr.mxu0 0.0
        %1169 = vmatpush1.msra.mxu0 %v1036
        %1170 = vmatprep.subr.mxu0 0.0
        %1171 = vmatpush1.msra.mxu0 %v1037
        %1172 = vmatprep.subr.mxu0 0.0
        %1173 = vmatpush1.msra.mxu0 %v1038
        %1174 = vmatprep.subr.mxu0 0.0
        %1175 = vmatpush1.msra.mxu0 %v1039
        %1176 = vmatprep.subr.mxu0 0.0
        %1177 = vmatpush1.msra.mxu0 0.0
        %1178 = vmatprep.subr.mxu0 0.0
        %1179 = vmatpush1.msra.mxu0 0.0
        %1180 = vmatprep.subr.mxu0 0.0
        %1181 = vmatpush1.msra.mxu0 0.0
        %1182 = vmatprep.subr.mxu0 0.0
        %1183 = vmatpush1.msra.mxu0 0.0
        %1184 = vmatprep.subr.mxu0 0.0
        %1185 = vmatpush1.msra.mxu0 0.0
        %1186 = vmatprep.subr.mxu0 0.0
        %1187 = vmatpush1.msra.mxu0 0.0
        %1188 = vmatprep.subr.mxu0 0.0
        %1189 = vmatpush1.msra.mxu0 0.0
        %1190 = vmatprep.subr.mxu0 0.0
        %1191 = vmatpush1.msra.mxu0 0.0
        %1192 = vmatprep.subr.mxu0 0.0
        %1193 = vmatpush1.msra.mxu0 0.0
        %1194 = vmatprep.subr.mxu0 0.0
        %1195 = vmatpush1.msra.mxu0 0.0
        %1196 = vmatprep.subr.mxu0 0.0
        %1197 = vmatpush1.msra.mxu0 0.0
        %1198 = vmatprep.subr.mxu0 0.0
        %1199 = vmatpush1.msra.mxu0 0.0
        %1200 = vmatprep.subr.mxu0 0.0
        %1201 = vmatpush1.msra.mxu0 0.0
        %1202 = vmatprep.subr.mxu0 0.0
        %1203 = vmatpush1.msra.mxu0 0.0
        %1204 = vmatprep.subr.mxu0 0.0
        %1205 = vmatpush1.msra.mxu0 0.0
        %1206 = vmatprep.subr.mxu0 0.0
        %1207 = vmatpush1.msra.mxu0 0.0
        %1208 = vmatprep.subr.mxu0 0.0
        %1209 = vmatpush1.msra.mxu0 0.0
        %1210 = vmatprep.subr.mxu0 0.0
        %1211 = vmatpush1.msra.mxu0 0.0
        %1212 = vmatprep.subr.mxu0 0.0
        %1213 = vmatpush1.msra.mxu0 0.0
        %1214 = vmatprep.subr.mxu0 0.0
        %1215 = vmatpush1.msra.mxu0 0.0
        %1216 = vmatprep.subr.mxu0 0.0
        %1217 = vmatpush1.msra.mxu0 0.0
        %1218 = vmatprep.subr.mxu0 0.0
        %1219 = vmatpush1.msra.mxu0 0.0
        %1220 = vmatprep.subr.mxu0 0.0
        %1221 = vmatpush1.msra.mxu0 0.0
        %1222 = vmatprep.subr.mxu0 0.0
        %1223 = vmatpush1.msra.mxu0 0.0
        %1224 = vmatprep.subr.mxu0 0.0
        %1225 = vmatpush1.msra.mxu0 0.0
        %1226 = vmatprep.subr.mxu0 0.0
        %1227 = vmatpush1.msra.mxu0 0.0
        %1228 = vmatprep.subr.mxu0 0.0
        %1229 = vmatpush1.msra.mxu0 0.0
        %1230 = vmatprep.subr.mxu0 0.0
        %1231 = vmatpush1.msra.mxu0 0.0
        %1232 = vmatprep.mubr.f32.mxu0 0.0
        %1233 = vmatmul.mubr.f32.gmra.mrb[0].mxu0 %v1096
        %v1234 = vpop.f32.mrb[0].mxu0
        %v1235 = vadd.f32 %v1082, %v1234
        %v1236 = vpop.f32.mrb[0].mxu0
        %1237 = vdwg.mxu0
        %1238 = vmatprep.subr.mxu0 0.0
        %1239 = vmatpush1.msra.mxu0 %v1040
        %1240 = vmatprep.subr.mxu0 0.0
        %1241 = vmatpush1.msra.mxu0 %v1041
        %1242 = vmatprep.subr.mxu0 0.0
        %1243 = vmatpush1.msra.mxu0 %v1042
        %1244 = vmatprep.subr.mxu0 0.0
        %1245 = vmatpush1.msra.mxu0 %v1043
        %1246 = vmatprep.subr.mxu0 0.0
        %1247 = vmatpush1.msra.mxu0 0.0
        %1248 = vmatprep.subr.mxu0 0.0
        %1249 = vmatpush1.msra.mxu0 0.0
        %1250 = vmatprep.subr.mxu0 0.0
        %1251 = vmatpush1.msra.mxu0 0.0
        %1252 = vmatprep.subr.mxu0 0.0
        %1253 = vmatpush1.msra.mxu0 0.0
        %1254 = vmatprep.subr.mxu0 0.0
        %1255 = vmatpush1.msra.mxu0 0.0
        %1256 = vmatprep.subr.mxu0 0.0
        %1257 = vmatpush1.msra.mxu0 0.0
        %1258 = vmatprep.subr.mxu0 0.0
        %1259 = vmatpush1.msra.mxu0 0.0
        %1260 = vmatprep.subr.mxu0 0.0
        %1261 = vmatpush1.msra.mxu0 0.0
        %1262 = vmatprep.subr.mxu0 0.0
        %1263 = vmatpush1.msra.mxu0 0.0
        %1264 = vmatprep.subr.mxu0 0.0
        %1265 = vmatpush1.msra.mxu0 0.0
        %1266 = vmatprep.subr.mxu0 0.0
        %1267 = vmatpush1.msra.mxu0 0.0
        %1268 = vmatprep.subr.mxu0 0.0
        %1269 = vmatpush1.msra.mxu0 0.0
        %1270 = vmatprep.subr.mxu0 0.0
        %1271 = vmatpush1.msra.mxu0 0.0
        %1272 = vmatprep.subr.mxu0 0.0
        %1273 = vmatpush1.msra.mxu0 0.0
        %1274 = vmatprep.subr.mxu0 0.0
        %1275 = vmatpush1.msra.mxu0 0.0
        %1276 = vmatprep.subr.mxu0 0.0
        %1277 = vmatpush1.msra.mxu0 0.0
        %1278 = vmatprep.subr.mxu0 0.0
        %1279 = vmatpush1.msra.mxu0 0.0
        %1280 = vmatprep.subr.mxu0 0.0
        %1281 = vmatpush1.msra.mxu0 0.0
        %1282 = vmatprep.subr.mxu0 0.0
        %1283 = vmatpush1.msra.mxu0 0.0
        %1284 = vmatprep.subr.mxu0 0.0
        %1285 = vmatpush1.msra.mxu0 0.0
        %1286 = vmatprep.subr.mxu0 0.0
        %1287 = vmatpush1.msra.mxu0 0.0
        %1288 = vmatprep.subr.mxu0 0.0
        %1289 = vmatpush1.msra.mxu0 0.0
        %1290 = vmatprep.subr.mxu0 0.0
        %1291 = vmatpush1.msra.mxu0 0.0
        %1292 = vmatprep.subr.mxu0 0.0
        %1293 = vmatpush1.msra.mxu0 0.0
        %1294 = vmatprep.subr.mxu0 0.0
        %1295 = vmatpush1.msra.mxu0 0.0
        %1296 = vmatprep.subr.mxu0 0.0
        %1297 = vmatpush1.msra.mxu0 0.0
        %1298 = vmatprep.subr.mxu0 0.0
        %1299 = vmatpush1.msra.mxu0 0.0
        %1300 = vmatprep.subr.mxu0 0.0
        %1301 = vmatpush1.msra.mxu0 0.0
        %1302 = vmatprep.mubr.f32.mxu0 0.0
        %1303 = vmatmul.mubr.f32.gmra.mrb[0].mxu0 %v1096
        %v1304 = vpop.f32.mrb[0].mxu0
        %v1305 = vadd.f32 %v1086, %v1304
        %v1306 = vpop.f32.mrb[0].mxu0
        %1307 = vdwg.mxu0
        %1308 = vmatprep.subr.mxu0 0.0
        %1309 = vmatpush1.msra.mxu0 %v1044
        %1310 = vmatprep.subr.mxu0 0.0
        %1311 = vmatpush1.msra.mxu0 %v1045
        %1312 = vmatprep.subr.mxu0 0.0
        %1313 = vmatpush1.msra.mxu0 %v1046
        %1314 = vmatprep.subr.mxu0 0.0
        %1315 = vmatpush1.msra.mxu0 %v1047
        %1316 = vmatprep.subr.mxu0 0.0
        %1317 = vmatpush1.msra.mxu0 0.0
        %1318 = vmatprep.subr.mxu0 0.0
        %1319 = vmatpush1.msra.mxu0 0.0
        %1320 = vmatprep.subr.mxu0 0.0
        %1321 = vmatpush1.msra.mxu0 0.0
        %1322 = vmatprep.subr.mxu0 0.0
        %1323 = vmatpush1.msra.mxu0 0.0
        %1324 = vmatprep.subr.mxu0 0.0
        %1325 = vmatpush1.msra.mxu0 0.0
        %1326 = vmatprep.subr.mxu0 0.0
        %1327 = vmatpush1.msra.mxu0 0.0
        %1328 = vmatprep.subr.mxu0 0.0
        %1329 = vmatpush1.msra.mxu0 0.0
        %1330 = vmatprep.subr.mxu0 0.0
        %1331 = vmatpush1.msra.mxu0 0.0
        %1332 = vmatprep.subr.mxu0 0.0
        %1333 = vmatpush1.msra.mxu0 0.0
        %1334 = vmatprep.subr.mxu0 0.0
        %1335 = vmatpush1.msra.mxu0 0.0
        %1336 = vmatprep.subr.mxu0 0.0
        %1337 = vmatpush1.msra.mxu0 0.0
        %1338 = vmatprep.subr.mxu0 0.0
        %1339 = vmatpush1.msra.mxu0 0.0
        %1340 = vmatprep.subr.mxu0 0.0
        %1341 = vmatpush1.msra.mxu0 0.0
        %1342 = vmatprep.subr.mxu0 0.0
        %1343 = vmatpush1.msra.mxu0 0.0
        %1344 = vmatprep.subr.mxu0 0.0
        %1345 = vmatpush1.msra.mxu0 0.0
        %1346 = vmatprep.subr.mxu0 0.0
        %1347 = vmatpush1.msra.mxu0 0.0
        %1348 = vmatprep.subr.mxu0 0.0
        %1349 = vmatpush1.msra.mxu0 0.0
        %1350 = vmatprep.subr.mxu0 0.0
        %1351 = vmatpush1.msra.mxu0 0.0
        %1352 = vmatprep.subr.mxu0 0.0
        %1353 = vmatpush1.msra.mxu0 0.0
        %1354 = vmatprep.subr.mxu0 0.0
        %1355 = vmatpush1.msra.mxu0 0.0
        %1356 = vmatprep.subr.mxu0 0.0
        %1357 = vmatpush1.msra.mxu0 0.0
        %1358 = vmatprep.subr.mxu0 0.0
        %1359 = vmatpush1.msra.mxu0 0.0
        %1360 = vmatprep.subr.mxu0 0.0
        %1361 = vmatpush1.msra.mxu0 0.0
        %1362 = vmatprep.subr.mxu0 0.0
        %1363 = vmatpush1.msra.mxu0 0.0
        %1364 = vmatprep.subr.mxu0 0.0
        %1365 = vmatpush1.msra.mxu0 0.0
        %1366 = vmatprep.subr.mxu0 0.0
        %1367 = vmatpush1.msra.mxu0 0.0
        %1368 = vmatprep.subr.mxu0 0.0
        %1369 = vmatpush1.msra.mxu0 0.0
        %1370 = vmatprep.subr.mxu0 0.0
        %1371 = vmatpush1.msra.mxu0 0.0
        %1372 = vmatprep.mubr.f32.mxu0 0.0
        %1373 = vmatmul.mubr.f32.gmra.mrb[0].mxu0 %v1096
        %v1374 = vpop.f32.mrb[0].mxu0
        %v1375 = vadd.f32 %v1090, %v1374
        %v1376 = vpop.f32.mrb[0].mxu0
        %1377 = vdwg.mxu0
        %v1378 = vld [vmem:[%s6] sm:$0xff]
        %vm1379 = vcmask 64512
        %v1381 = vsel %vm1379, %v469, 0
        %v1384 = vsel %vm1379, %v539, 0
        %v1387 = vsel %vm1379, %v609, 0
        %v1390 = vsel %vm1379, %v679, 0
        %1392 = vmatprep.subr.mxu0 0.0
        %1393 = vmatpush1.msra.mxu0 %v1378
        %1394 = vmatprep.subr.mxu0 0.0
        %1395 = vmatpush1.msra.mxu0 0.0
        %1396 = vmatprep.subr.mxu0 0.0
        %1397 = vmatpush1.msra.mxu0 0.0
        %1398 = vmatprep.subr.mxu0 0.0
        %1399 = vmatpush1.msra.mxu0 0.0
        %1400 = vmatprep.subr.mxu0 0.0
        %1401 = vmatpush1.msra.mxu0 0.0
        %1402 = vmatprep.subr.mxu0 0.0
        %1403 = vmatpush1.msra.mxu0 0.0
        %1404 = vmatprep.subr.mxu0 0.0
        %1405 = vmatpush1.msra.mxu0 0.0
        %1406 = vmatprep.subr.mxu0 0.0
        %1407 = vmatpush1.msra.mxu0 0.0
        %1408 = vmatprep.subr.mxu0 0.0
        %1409 = vmatpush1.msra.mxu0 0.0
        %1410 = vmatprep.subr.mxu0 0.0
        %1411 = vmatpush1.msra.mxu0 0.0
        %1412 = vmatprep.subr.mxu0 0.0
        %1413 = vmatpush1.msra.mxu0 0.0
        %1414 = vmatprep.subr.mxu0 0.0
        %1415 = vmatpush1.msra.mxu0 0.0
        %1416 = vmatprep.subr.mxu0 0.0
        %1417 = vmatpush1.msra.mxu0 0.0
        %1418 = vmatprep.subr.mxu0 0.0
        %1419 = vmatpush1.msra.mxu0 0.0
        %1420 = vmatprep.subr.mxu0 0.0
        %1421 = vmatpush1.msra.mxu0 0.0
        %1422 = vmatprep.subr.mxu0 0.0
        %1423 = vmatpush1.msra.mxu0 0.0
        %1424 = vmatprep.subr.mxu0 0.0
        %1425 = vmatpush1.msra.mxu0 0.0
        %1426 = vmatprep.subr.mxu0 0.0
        %1427 = vmatpush1.msra.mxu0 0.0
        %1428 = vmatprep.subr.mxu0 0.0
        %1429 = vmatpush1.msra.mxu0 0.0
        %1430 = vmatprep.subr.mxu0 0.0
        %1431 = vmatpush1.msra.mxu0 0.0
        %1432 = vmatprep.subr.mxu0 0.0
        %1433 = vmatpush1.msra.mxu0 0.0
        %1434 = vmatprep.subr.mxu0 0.0
        %1435 = vmatpush1.msra.mxu0 0.0
        %1436 = vmatprep.subr.mxu0 0.0
        %1437 = vmatpush1.msra.mxu0 0.0
        %1438 = vmatprep.subr.mxu0 0.0
        %1439 = vmatpush1.msra.mxu0 0.0
        %1440 = vmatprep.subr.mxu0 0.0
        %1441 = vmatpush1.msra.mxu0 0.0
        %1442 = vmatprep.subr.mxu0 0.0
        %1443 = vmatpush1.msra.mxu0 0.0
        %1444 = vmatprep.subr.mxu0 0.0
        %1445 = vmatpush1.msra.mxu0 0.0
        %1446 = vmatprep.subr.mxu0 0.0
        %1447 = vmatpush1.msra.mxu0 0.0
        %1448 = vmatprep.subr.mxu0 0.0
        %1449 = vmatpush1.msra.mxu0 0.0
        %1450 = vmatprep.subr.mxu0 0.0
        %1451 = vmatpush1.msra.mxu0 0.0
        %1452 = vmatprep.subr.mxu0 0.0
        %1453 = vmatpush1.msra.mxu0 0.0
        %1454 = vmatprep.subr.mxu0 0.0
        %1455 = vmatpush1.msra.mxu0 0.0
        %1456 = vmatprep.mubr.f32.mxu0 0.0
        %1457 = vmatmul.mubr.f32.gmra.mrb[0].mxu0 %v1381
        %v1458 = vpop.f32.mrb[0].mxu0
        %v1459 = vadd.f32 0.0, %v1458
        %v1460 = vpop.f32.mrb[0].mxu0
        %1461 = vmatprep.mubr.f32.mxu0 0.0
        %1462 = vmatmul.mubr.f32.gmra.mrb[0].mxu0 %v1384
        %v1463 = vpop.f32.mrb[0].mxu0
        %v1464 = vadd.f32 0.0, %v1463
        %v1465 = vpop.f32.mrb[0].mxu0
        %1466 = vmatprep.mubr.f32.mxu0 0.0
        %1467 = vmatmul.mubr.f32.gmra.mrb[0].mxu0 %v1387
        %v1468 = vpop.f32.mrb[0].mxu0
        %v1469 = vadd.f32 0.0, %v1468
        %v1470 = vpop.f32.mrb[0].mxu0
        %1471 = vmatprep.mubr.f32.mxu0 0.0
        %1472 = vmatmul.mubr.f32.gmra.mrb[0].mxu0 %v1390
        %v1473 = vpop.f32.mrb[0].mxu0
        %v1474 = vadd.f32 0.0, %v1473
        %v1475 = vpop.f32.mrb[0].mxu0
        %1476 = vdwg.mxu0
        %1478 = vrot.lane.b32.xlu0 %v1459, 256
        %v1479 = vpop.permute.xlu0 %1478
        %1481 = vrot.lane.b32.xlu0 %v1464, 256
        %v1482 = vpop.permute.xlu0 %1481
        %1484 = vrot.lane.b32.xlu0 %v1469, 256
        %v1485 = vpop.permute.xlu0 %1484
        %1487 = vrot.lane.b32.xlu0 %v1474, 256
        %v1488 = vpop.permute.xlu0 %1487
        %v1490 = vsel %vm1379, %v817, 0
        %1492 = vmatprep.subr.mxu0 0.0
        %1493 = vmatpush1.xpose.msra.mxu0 %v1490
        %1494 = vmatprep.subr.mxu0 0.0
        %1495 = vmatpush1.xpose.msra.mxu0 0.0
        %1496 = vmatprep.subr.mxu0 0.0
        %1497 = vmatpush1.xpose.msra.mxu0 0.0
        %1498 = vmatprep.subr.mxu0 0.0
        %1499 = vmatpush1.xpose.msra.mxu0 0.0
        %1500 = vmatprep.subr.mxu0 0.0
        %1501 = vmatpush1.xpose.msra.mxu0 0.0
        %1502 = vmatprep.subr.mxu0 0.0
        %1503 = vmatpush1.xpose.msra.mxu0 0.0
        %1504 = vmatprep.subr.mxu0 0.0
        %1505 = vmatpush1.xpose.msra.mxu0 0.0
        %1506 = vmatprep.subr.mxu0 0.0
        %1507 = vmatpush1.xpose.msra.mxu0 0.0
        %1508 = vmatprep.subr.mxu0 0.0
        %1509 = vmatpush1.xpose.msra.mxu0 0.0
        %1510 = vmatprep.subr.mxu0 0.0
        %1511 = vmatpush1.xpose.msra.mxu0 0.0
        %1512 = vmatprep.subr.mxu0 0.0
        %1513 = vmatpush1.xpose.msra.mxu0 0.0
        %1514 = vmatprep.subr.mxu0 0.0
        %1515 = vmatpush1.xpose.msra.mxu0 0.0
        %1516 = vmatprep.subr.mxu0 0.0
        %1517 = vmatpush1.xpose.msra.mxu0 0.0
        %1518 = vmatprep.subr.mxu0 0.0
        %1519 = vmatpush1.xpose.msra.mxu0 0.0
        %1520 = vmatprep.subr.mxu0 0.0
        %1521 = vmatpush1.xpose.msra.mxu0 0.0
        %1522 = vmatprep.subr.mxu0 0.0
        %1523 = vmatpush1.xpose.msra.mxu0 0.0
        %1524 = vmatprep.subr.mxu0 0.0
        %1525 = vmatpush1.xpose.msra.mxu0 0.0
        %1526 = vmatprep.subr.mxu0 0.0
        %1527 = vmatpush1.xpose.msra.mxu0 0.0
        %1528 = vmatprep.subr.mxu0 0.0
        %1529 = vmatpush1.xpose.msra.mxu0 0.0
        %1530 = vmatprep.subr.mxu0 0.0
        %1531 = vmatpush1.xpose.msra.mxu0 0.0
        %1532 = vmatprep.subr.mxu0 0.0
        %1533 = vmatpush1.xpose.msra.mxu0 0.0
        %1534 = vmatprep.subr.mxu0 0.0
        %1535 = vmatpush1.xpose.msra.mxu0 0.0
        %1536 = vmatprep.subr.mxu0 0.0
        %1537 = vmatpush1.xpose.msra.mxu0 0.0
        %1538 = vmatprep.subr.mxu0 0.0
        %1539 = vmatpush1.xpose.msra.mxu0 0.0
        %1540 = vmatprep.subr.mxu0 0.0
        %1541 = vmatpush1.xpose.msra.mxu0 0.0
        %1542 = vmatprep.subr.mxu0 0.0
        %1543 = vmatpush1.xpose.msra.mxu0 0.0
        %1544 = vmatprep.subr.mxu0 0.0
        %1545 = vmatpush1.xpose.msra.mxu0 0.0
        %1546 = vmatprep.subr.mxu0 0.0
        %1547 = vmatpush1.xpose.msra.mxu0 0.0
        %1548 = vmatprep.subr.mxu0 0.0
        %1549 = vmatpush1.xpose.msra.mxu0 0.0
        %1550 = vmatprep.subr.mxu0 0.0
        %1551 = vmatpush1.xpose.msra.mxu0 0.0
        %1552 = vmatprep.subr.mxu0 0.0
        %1553 = vmatpush1.xpose.msra.mxu0 0.0
        %1554 = vmatprep.subr.mxu0 0.0
        %1555 = vmatpush1.xpose.msra.mxu0 0.0
        %1556 = vmatprep.mubr.f32.mxu0 0.0
        %1557 = vmatmul.mubr.f32.gmra.mrb[0].mxu0 %v1381
        %v1558 = vpop.f32.mrb[0].mxu0
        %v1559 = vadd.f32 %v1479, %v1558
        %v1560 = vpop.f32.mrb[0].mxu0
        %1561 = vdwg.mxu0
        %v1563 = vsel %vm1379, %v887, 0
        %1565 = vmatprep.subr.mxu0 0.0
        %1566 = vmatpush1.xpose.msra.mxu0 %v1563
        %1567 = vmatprep.subr.mxu0 0.0
        %1568 = vmatpush1.xpose.msra.mxu0 0.0
        %1569 = vmatprep.subr.mxu0 0.0
        %1570 = vmatpush1.xpose.msra.mxu0 0.0
        %1571 = vmatprep.subr.mxu0 0.0
        %1572 = vmatpush1.xpose.msra.mxu0 0.0
        %1573 = vmatprep.subr.mxu0 0.0
        %1574 = vmatpush1.xpose.msra.mxu0 0.0
        %1575 = vmatprep.subr.mxu0 0.0
        %1576 = vmatpush1.xpose.msra.mxu0 0.0
        %1577 = vmatprep.subr.mxu0 0.0
        %1578 = vmatpush1.xpose.msra.mxu0 0.0
        %1579 = vmatprep.subr.mxu0 0.0
        %1580 = vmatpush1.xpose.msra.mxu0 0.0
        %1581 = vmatprep.subr.mxu0 0.0
        %1582 = vmatpush1.xpose.msra.mxu0 0.0
        %1583 = vmatprep.subr.mxu0 0.0
        %1584 = vmatpush1.xpose.msra.mxu0 0.0
        %1585 = vmatprep.subr.mxu0 0.0
        %1586 = vmatpush1.xpose.msra.mxu0 0.0
        %1587 = vmatprep.subr.mxu0 0.0
        %1588 = vmatpush1.xpose.msra.mxu0 0.0
        %1589 = vmatprep.subr.mxu0 0.0
        %1590 = vmatpush1.xpose.msra.mxu0 0.0
        %1591 = vmatprep.subr.mxu0 0.0
        %1592 = vmatpush1.xpose.msra.mxu0 0.0
        %1593 = vmatprep.subr.mxu0 0.0
        %1594 = vmatpush1.xpose.msra.mxu0 0.0
        %1595 = vmatprep.subr.mxu0 0.0
        %1596 = vmatpush1.xpose.msra.mxu0 0.0
        %1597 = vmatprep.subr.mxu0 0.0
        %1598 = vmatpush1.xpose.msra.mxu0 0.0
        %1599 = vmatprep.subr.mxu0 0.0
        %1600 = vmatpush1.xpose.msra.mxu0 0.0
        %1601 = vmatprep.subr.mxu0 0.0
        %1602 = vmatpush1.xpose.msra.mxu0 0.0
        %1603 = vmatprep.subr.mxu0 0.0
        %1604 = vmatpush1.xpose.msra.mxu0 0.0
        %1605 = vmatprep.subr.mxu0 0.0
        %1606 = vmatpush1.xpose.msra.mxu0 0.0
        %1607 = vmatprep.subr.mxu0 0.0
        %1608 = vmatpush1.xpose.msra.mxu0 0.0
        %1609 = vmatprep.subr.mxu0 0.0
        %1610 = vmatpush1.xpose.msra.mxu0 0.0
        %1611 = vmatprep.subr.mxu0 0.0
        %1612 = vmatpush1.xpose.msra.mxu0 0.0
        %1613 = vmatprep.subr.mxu0 0.0
        %1614 = vmatpush1.xpose.msra.mxu0 0.0
        %1615 = vmatprep.subr.mxu0 0.0
        %1616 = vmatpush1.xpose.msra.mxu0 0.0
        %1617 = vmatprep.subr.mxu0 0.0
        %1618 = vmatpush1.xpose.msra.mxu0 0.0
        %1619 = vmatprep.subr.mxu0 0.0
        %1620 = vmatpush1.xpose.msra.mxu0 0.0
        %1621 = vmatprep.subr.mxu0 0.0
        %1622 = vmatpush1.xpose.msra.mxu0 0.0
        %1623 = vmatprep.subr.mxu0 0.0
        %1624 = vmatpush1.xpose.msra.mxu0 0.0
        %1625 = vmatprep.subr.mxu0 0.0
        %1626 = vmatpush1.xpose.msra.mxu0 0.0
        %1627 = vmatprep.subr.mxu0 0.0
        %1628 = vmatpush1.xpose.msra.mxu0 0.0
        %1629 = vmatprep.mubr.f32.mxu0 0.0
        %1630 = vmatmul.mubr.f32.gmra.mrb[0].mxu0 %v1384
        %v1631 = vpop.f32.mrb[0].mxu0
        %v1632 = vadd.f32 %v1482, %v1631
        %v1633 = vpop.f32.mrb[0].mxu0
        %1634 = vdwg.mxu0
        %v1636 = vsel %vm1379, %v957, 0
        %1638 = vmatprep.subr.mxu0 0.0
        %1639 = vmatpush1.xpose.msra.mxu0 %v1636
        %1640 = vmatprep.subr.mxu0 0.0
        %1641 = vmatpush1.xpose.msra.mxu0 0.0
        %1642 = vmatprep.subr.mxu0 0.0
        %1643 = vmatpush1.xpose.msra.mxu0 0.0
        %1644 = vmatprep.subr.mxu0 0.0
        %1645 = vmatpush1.xpose.msra.mxu0 0.0
        %1646 = vmatprep.subr.mxu0 0.0
        %1647 = vmatpush1.xpose.msra.mxu0 0.0
        %1648 = vmatprep.subr.mxu0 0.0
        %1649 = vmatpush1.xpose.msra.mxu0 0.0
        %1650 = vmatprep.subr.mxu0 0.0
        %1651 = vmatpush1.xpose.msra.mxu0 0.0
        %1652 = vmatprep.subr.mxu0 0.0
        %1653 = vmatpush1.xpose.msra.mxu0 0.0
        %1654 = vmatprep.subr.mxu0 0.0
        %1655 = vmatpush1.xpose.msra.mxu0 0.0
        %1656 = vmatprep.subr.mxu0 0.0
        %1657 = vmatpush1.xpose.msra.mxu0 0.0
        %1658 = vmatprep.subr.mxu0 0.0
        %1659 = vmatpush1.xpose.msra.mxu0 0.0
        %1660 = vmatprep.subr.mxu0 0.0
        %1661 = vmatpush1.xpose.msra.mxu0 0.0
        %1662 = vmatprep.subr.mxu0 0.0
        %1663 = vmatpush1.xpose.msra.mxu0 0.0
        %1664 = vmatprep.subr.mxu0 0.0
        %1665 = vmatpush1.xpose.msra.mxu0 0.0
        %1666 = vmatprep.subr.mxu0 0.0
        %1667 = vmatpush1.xpose.msra.mxu0 0.0
        %1668 = vmatprep.subr.mxu0 0.0
        %1669 = vmatpush1.xpose.msra.mxu0 0.0
        %1670 = vmatprep.subr.mxu0 0.0
        %1671 = vmatpush1.xpose.msra.mxu0 0.0
        %1672 = vmatprep.subr.mxu0 0.0
        %1673 = vmatpush1.xpose.msra.mxu0 0.0
        %1674 = vmatprep.subr.mxu0 0.0
        %1675 = vmatpush1.xpose.msra.mxu0 0.0
        %1676 = vmatprep.subr.mxu0 0.0
        %1677 = vmatpush1.xpose.msra.mxu0 0.0
        %1678 = vmatprep.subr.mxu0 0.0
        %1679 = vmatpush1.xpose.msra.mxu0 0.0
        %1680 = vmatprep.subr.mxu0 0.0
        %1681 = vmatpush1.xpose.msra.mxu0 0.0
        %1682 = vmatprep.subr.mxu0 0.0
        %1683 = vmatpush1.xpose.msra.mxu0 0.0
        %1684 = vmatprep.subr.mxu0 0.0
        %1685 = vmatpush1.xpose.msra.mxu0 0.0
        %1686 = vmatprep.subr.mxu0 0.0
        %1687 = vmatpush1.xpose.msra.mxu0 0.0
        %1688 = vmatprep.subr.mxu0 0.0
        %1689 = vmatpush1.xpose.msra.mxu0 0.0
        %1690 = vmatprep.subr.mxu0 0.0
        %1691 = vmatpush1.xpose.msra.mxu0 0.0
        %1692 = vmatprep.subr.mxu0 0.0
        %1693 = vmatpush1.xpose.msra.mxu0 0.0
        %1694 = vmatprep.subr.mxu0 0.0
        %1695 = vmatpush1.xpose.msra.mxu0 0.0
        %1696 = vmatprep.subr.mxu0 0.0
        %1697 = vmatpush1.xpose.msra.mxu0 0.0
        %1698 = vmatprep.subr.mxu0 0.0
        %1699 = vmatpush1.xpose.msra.mxu0 0.0
        %1700 = vmatprep.subr.mxu0 0.0
        %1701 = vmatpush1.xpose.msra.mxu0 0.0
        %1702 = vmatprep.mubr.f32.mxu0 0.0
        %1703 = vmatmul.mubr.f32.gmra.mrb[0].mxu0 %v1387
        %v1704 = vpop.f32.mrb[0].mxu0
        %v1705 = vadd.f32 %v1485, %v1704
        %v1706 = vpop.f32.mrb[0].mxu0
        %1707 = vdwg.mxu0
        %v1709 = vsel %vm1379, %v1027, 0
        %1711 = vmatprep.subr.mxu0 0.0
        %1712 = vmatpush1.xpose.msra.mxu0 %v1709
        %1713 = vmatprep.subr.mxu0 0.0
        %1714 = vmatpush1.xpose.msra.mxu0 0.0
        %1715 = vmatprep.subr.mxu0 0.0
        %1716 = vmatpush1.xpose.msra.mxu0 0.0
        %1717 = vmatprep.subr.mxu0 0.0
        %1718 = vmatpush1.xpose.msra.mxu0 0.0
        %1719 = vmatprep.subr.mxu0 0.0
        %1720 = vmatpush1.xpose.msra.mxu0 0.0
        %1721 = vmatprep.subr.mxu0 0.0
        %1722 = vmatpush1.xpose.msra.mxu0 0.0
        %1723 = vmatprep.subr.mxu0 0.0
        %1724 = vmatpush1.xpose.msra.mxu0 0.0
        %1725 = vmatprep.subr.mxu0 0.0
        %1726 = vmatpush1.xpose.msra.mxu0 0.0
        %1727 = vmatprep.subr.mxu0 0.0
        %1728 = vmatpush1.xpose.msra.mxu0 0.0
        %1729 = vmatprep.subr.mxu0 0.0
        %1730 = vmatpush1.xpose.msra.mxu0 0.0
        %1731 = vmatprep.subr.mxu0 0.0
        %1732 = vmatpush1.xpose.msra.mxu0 0.0
        %1733 = vmatprep.subr.mxu0 0.0
        %1734 = vmatpush1.xpose.msra.mxu0 0.0
        %1735 = vmatprep.subr.mxu0 0.0
        %1736 = vmatpush1.xpose.msra.mxu0 0.0
        %1737 = vmatprep.subr.mxu0 0.0
        %1738 = vmatpush1.xpose.msra.mxu0 0.0
        %1739 = vmatprep.subr.mxu0 0.0
        %1740 = vmatpush1.xpose.msra.mxu0 0.0
        %1741 = vmatprep.subr.mxu0 0.0
        %1742 = vmatpush1.xpose.msra.mxu0 0.0
        %1743 = vmatprep.subr.mxu0 0.0
        %1744 = vmatpush1.xpose.msra.mxu0 0.0
        %1745 = vmatprep.subr.mxu0 0.0
        %1746 = vmatpush1.xpose.msra.mxu0 0.0
        %1747 = vmatprep.subr.mxu0 0.0
        %1748 = vmatpush1.xpose.msra.mxu0 0.0
        %1749 = vmatprep.subr.mxu0 0.0
        %1750 = vmatpush1.xpose.msra.mxu0 0.0
        %1751 = vmatprep.subr.mxu0 0.0
        %1752 = vmatpush1.xpose.msra.mxu0 0.0
        %1753 = vmatprep.subr.mxu0 0.0
        %1754 = vmatpush1.xpose.msra.mxu0 0.0
        %1755 = vmatprep.subr.mxu0 0.0
        %1756 = vmatpush1.xpose.msra.mxu0 0.0
        %1757 = vmatprep.subr.mxu0 0.0
        %1758 = vmatpush1.xpose.msra.mxu0 0.0
        %1759 = vmatprep.subr.mxu0 0.0
        %1760 = vmatpush1.xpose.msra.mxu0 0.0
        %1761 = vmatprep.subr.mxu0 0.0
        %1762 = vmatpush1.xpose.msra.mxu0 0.0
        %1763 = vmatprep.subr.mxu0 0.0
        %1764 = vmatpush1.xpose.msra.mxu0 0.0
        %1765 = vmatprep.subr.mxu0 0.0
        %1766 = vmatpush1.xpose.msra.mxu0 0.0
        %1767 = vmatprep.subr.mxu0 0.0
        %1768 = vmatpush1.xpose.msra.mxu0 0.0
        %1769 = vmatprep.subr.mxu0 0.0
        %1770 = vmatpush1.xpose.msra.mxu0 0.0
        %1771 = vmatprep.subr.mxu0 0.0
        %1772 = vmatpush1.xpose.msra.mxu0 0.0
        %1773 = vmatprep.subr.mxu0 0.0
        %1774 = vmatpush1.xpose.msra.mxu0 0.0
        %1775 = vmatprep.mubr.f32.mxu0 0.0
        %1776 = vmatmul.mubr.f32.gmra.mrb[0].mxu0 %v1390
        %v1777 = vpop.f32.mrb[0].mxu0
        %v1778 = vadd.f32 %v1488, %v1777
        %v1779 = vpop.f32.mrb[0].mxu0
        %1780 = vdwg.mxu0
        %v1781 = vsel %vm1379, %v1559, -inf
        %1782 = vmax.xlane.f32.xlu0 %v1781
        %v1783 = vpop.xlane.xlu0 %1782
        %v1784 = vsel %vm1379, %v1632, -inf
        %1785 = vmax.xlane.f32.xlu0 %v1784
        %v1786 = vpop.xlane.xlu0 %1785
        %v1787 = vsel %vm1379, %v1705, -inf
        %1788 = vmax.xlane.f32.xlu0 %v1787
        %v1789 = vpop.xlane.xlu0 %1788
        %v1790 = vsel %vm1379, %v1778, -inf
        %1791 = vmax.xlane.f32.xlu0 %v1790
        %v1792 = vpop.xlane.xlu0 %1791
        %v1793 = vsub.f32 %v1559, %v1783
        %v1794 = vsub.f32 %v1632, %v1786
        %v1795 = vsub.f32 %v1705, %v1789
        %v1796 = vsub.f32 %v1778, %v1792
        %v1797 = vmul.f32 %v1793, 1.442695
        %v1798 = vpow.pop %v1797
        %v1799 = vmul.f32 %v1794, 1.442695
        %v1800 = vpow.pop %v1799
        %v1801 = vmul.f32 %v1795, 1.442695
        %v1802 = vpow.pop %v1801
        %v1803 = vmul.f32 %v1796, 1.442695
        %v1804 = vpow.pop %v1803
        %v1805 = vsel %vm1379, %v1798, 0.0
        %1806 = vadd.xlane.f32.xlu0 %v1805
        %v1807 = vpop.xlane.xlu0 %1806
        %v1808 = vsel %vm1379, %v1800, 0.0
        %1809 = vadd.xlane.f32.xlu0 %v1808
        %v1810 = vpop.xlane.xlu0 %1809
        %v1811 = vsel %vm1379, %v1802, 0.0
        %1812 = vadd.xlane.f32.xlu0 %v1811
        %v1813 = vpop.xlane.xlu0 %1812
        %v1814 = vsel %vm1379, %v1804, 0.0
        %1815 = vadd.xlane.f32.xlu0 %v1814
        %v1816 = vpop.xlane.xlu0 %1815
        %v1817 = vrcp.pop %v1807
        %v1818 = vrcp.pop %v1810
        %v1819 = vrcp.pop %v1813
        %v1820 = vrcp.pop %v1816
        %v1821 = vmul.f32 %v1798, %v1817
        %v1822 = vmul.f32 %v1800, %v1818
        %v1823 = vmul.f32 %v1802, %v1819
        %v1824 = vmul.f32 %v1804, %v1820
        %v1825 = vlaneseq
        %v1826 = vand.u32 %v1825, 127
        %v1827 = vlaneseq
        %v1828 = vshrl.u32 %v1827, 7
        %v1829 = vsub.s32 7, %v1828
        %v1830 = vmul.u32 %v1829, 8
        %vm1831 = vcmp.ge.s32.totalorder %v1826, %v1830
        %v1832 = vadd.s32 %v1830, 8
        %vm1833 = vcmp.lt.s32.totalorder %v1826, %v1832
        %vm1834 = vmand %vm1831, %vm1833
        %1839 = vrot.lane.b32.xlu0 %v1821, 8
        %v1840 = vpop.permute.xlu0 %1839
        %1841 = vrot.lane.b32.xlu0 %v1822, 8
        %v1842 = vpop.permute.xlu0 %1841
        %1843 = vrot.lane.b32.xlu0 %v1823, 8
        %v1844 = vpop.permute.xlu0 %1843
        %1845 = vrot.lane.b32.xlu0 %v1824, 8
        %v1846 = vpop.permute.xlu0 %1845
        %1851 = vrot.lane.b32.xlu0 %v1821, 16
        %v1852 = vpop.permute.xlu0 %1851
        %1853 = vrot.lane.b32.xlu0 %v1822, 16
        %v1854 = vpop.permute.xlu0 %1853
        %1855 = vrot.lane.b32.xlu0 %v1823, 16
        %v1856 = vpop.permute.xlu0 %1855
        %1857 = vrot.lane.b32.xlu0 %v1824, 16
        %v1858 = vpop.permute.xlu0 %1857
        %1863 = vrot.lane.b32.xlu0 %v1821, 24
        %v1864 = vpop.permute.xlu0 %1863
        %1865 = vrot.lane.b32.xlu0 %v1822, 24
        %v1866 = vpop.permute.xlu0 %1865
        %1867 = vrot.lane.b32.xlu0 %v1823, 24
        %v1868 = vpop.permute.xlu0 %1867
        %1869 = vrot.lane.b32.xlu0 %v1824, 24
        %v1870 = vpop.permute.xlu0 %1869
        %1875 = vrot.lane.b32.xlu0 %v1821, 32
        %v1876 = vpop.permute.xlu0 %1875
        %1877 = vrot.lane.b32.xlu0 %v1822, 32
        %v1878 = vpop.permute.xlu0 %1877
        %1879 = vrot.lane.b32.xlu0 %v1823, 32
        %v1880 = vpop.permute.xlu0 %1879
        %1881 = vrot.lane.b32.xlu0 %v1824, 32
        %v1882 = vpop.permute.xlu0 %1881
        %1887 = vrot.lane.b32.xlu0 %v1821, 40
        %v1888 = vpop.permute.xlu0 %1887
        %1889 = vrot.lane.b32.xlu0 %v1822, 40
        %v1890 = vpop.permute.xlu0 %1889
        %1891 = vrot.lane.b32.xlu0 %v1823, 40
        %v1892 = vpop.permute.xlu0 %1891
        %1893 = vrot.lane.b32.xlu0 %v1824, 40
        %v1894 = vpop.permute.xlu0 %1893
        %1899 = vrot.lane.b32.xlu0 %v1821, 48
        %v1900 = vpop.permute.xlu0 %1899
        %1901 = vrot.lane.b32.xlu0 %v1822, 48
        %v1902 = vpop.permute.xlu0 %1901
        %1903 = vrot.lane.b32.xlu0 %v1823, 48
        %v1904 = vpop.permute.xlu0 %1903
        %1905 = vrot.lane.b32.xlu0 %v1824, 48
        %v1906 = vpop.permute.xlu0 %1905
        %1911 = vrot.lane.b32.xlu0 %v1821, 56
        %v1912 = vpop.permute.xlu0 %1911
        %1913 = vrot.lane.b32.xlu0 %v1822, 56
        %v1914 = vpop.permute.xlu0 %1913
        %1915 = vrot.lane.b32.xlu0 %v1823, 56
        %v1916 = vpop.permute.xlu0 %1915
        %1917 = vrot.lane.b32.xlu0 %v1824, 56
        %v1918 = vpop.permute.xlu0 %1917
        %v1923 = vsel %vm1379, %v1821, %v1840
        %v1924 = vsel %vm1379, %v1822, %v1842
        %v1925 = vsel %vm1379, %v1823, %v1844
        %v1926 = vsel %vm1379, %v1824, %v1846
        %vm1927 = vcmask 130048
        %v1928 = vsel %vm1927, %v1923, %v1852
        %v1929 = vsel %vm1927, %v1924, %v1854
        %v1930 = vsel %vm1927, %v1925, %v1856
        %v1931 = vsel %vm1927, %v1926, %v1858
        %vm1932 = vcmask 195584
        %v1933 = vsel %vm1932, %v1928, %v1864
        %v1934 = vsel %vm1932, %v1929, %v1866
        %v1935 = vsel %vm1932, %v1930, %v1868
        %v1936 = vsel %vm1932, %v1931, %v1870
        %v1937 = vsel %vm398, %v1933, %v1876
        %v1938 = vsel %vm398, %v1934, %v1878
        %v1939 = vsel %vm398, %v1935, %v1880
        %v1940 = vsel %vm398, %v1936, %v1882
        %vm1941 = vcmask 326656
        %v1942 = vsel %vm1941, %v1937, %v1888
        %v1943 = vsel %vm1941, %v1938, %v1890
        %v1944 = vsel %vm1941, %v1939, %v1892
        %v1945 = vsel %vm1941, %v1940, %v1894
        %vm1946 = vcmask 392192
        %v1947 = vsel %vm1946, %v1942, %v1900
        %v1948 = vsel %vm1946, %v1943, %v1902
        %v1949 = vsel %vm1946, %v1944, %v1904
        %v1950 = vsel %vm1946, %v1945, %v1906
        %vm1951 = vcmask 457728
        %v1952 = vsel %vm1951, %v1947, %v1912
        %v1953 = vsel %vm1951, %v1948, %v1914
        %v1954 = vsel %vm1951, %v1949, %v1916
        %v1955 = vsel %vm1951, %v1950, %v1918
        %v1956 = vsel %vm1834, 1, 0
        %vm1957 = vcmp.eq.s32.totalorder %v1956, 1
        %v1958 = vsel %vm1957, %v1952, 0.0
        %v1959 = vsel %vm1957, %v1953, 0.0
        %v1960 = vsel %vm1957, %v1954, 0.0
        %v1961 = vsel %vm1957, %v1955, 0.0
        %v1962 = vld [vmem:[%s7] sm:$0xff]
        %v1963 = vld [vmem:[%s7 + $0x8] sm:$0xff]
        %v1964 = vld [vmem:[%s7 + $0x10] sm:$0xff]
        %v1965 = vld [vmem:[%s7 + $0x18] sm:$0xff]
        %v1966 = vld [vmem:[%s7 + $0x20] sm:$0xff]
        %v1967 = vld [vmem:[%s7 + $0x28] sm:$0xff]
        %v1968 = vld [vmem:[%s7 + $0x30] sm:$0xff]
        %v1969 = vld [vmem:[%s7 + $0x38] sm:$0xff]
        %vm1970 = vcmask 523264
        %v1972 = vsel %vm1970, %v1958, 0
        %v1975 = vsel %vm1970, %v1959, 0
        %v1978 = vsel %vm1970, %v1960, 0
        %v1981 = vsel %vm1970, %v1961, 0
        %1983 = vmatprep.subr.mxu0 0.0
        %1984 = vmatpush1.msra.mxu0 %v1962
        %1985 = vmatprep.subr.mxu0 0.0
        %1986 = vmatpush1.msra.mxu0 %v1963
        %1987 = vmatprep.subr.mxu0 0.0
        %1988 = vmatpush1.msra.mxu0 %v1964
        %1989 = vmatprep.subr.mxu0 0.0
        %1990 = vmatpush1.msra.mxu0 %v1965
        %1991 = vmatprep.subr.mxu0 0.0
        %1992 = vmatpush1.msra.mxu0 %v1966
        %1993 = vmatprep.subr.mxu0 0.0
        %1994 = vmatpush1.msra.mxu0 %v1967
        %1995 = vmatprep.subr.mxu0 0.0
        %1996 = vmatpush1.msra.mxu0 %v1968
        %1997 = vmatprep.subr.mxu0 0.0
        %1998 = vmatpush1.msra.mxu0 %v1969
        %1999 = vmatprep.subr.mxu0 0.0
        %2000 = vmatpush1.msra.mxu0 0.0
        %2001 = vmatprep.subr.mxu0 0.0
        %2002 = vmatpush1.msra.mxu0 0.0
        %2003 = vmatprep.subr.mxu0 0.0
        %2004 = vmatpush1.msra.mxu0 0.0
        %2005 = vmatprep.subr.mxu0 0.0
        %2006 = vmatpush1.msra.mxu0 0.0
        %2007 = vmatprep.subr.mxu0 0.0
        %2008 = vmatpush1.msra.mxu0 0.0
        %2009 = vmatprep.subr.mxu0 0.0
        %2010 = vmatpush1.msra.mxu0 0.0
        %2011 = vmatprep.subr.mxu0 0.0
        %2012 = vmatpush1.msra.mxu0 0.0
        %2013 = vmatprep.subr.mxu0 0.0
        %2014 = vmatpush1.msra.mxu0 0.0
        %2015 = vmatprep.subr.mxu0 0.0
        %2016 = vmatpush1.msra.mxu0 0.0
        %2017 = vmatprep.subr.mxu0 0.0
        %2018 = vmatpush1.msra.mxu0 0.0
        %2019 = vmatprep.subr.mxu0 0.0
        %2020 = vmatpush1.msra.mxu0 0.0
        %2021 = vmatprep.subr.mxu0 0.0
        %2022 = vmatpush1.msra.mxu0 0.0
        %2023 = vmatprep.subr.mxu0 0.0
        %2024 = vmatpush1.msra.mxu0 0.0
        %2025 = vmatprep.subr.mxu0 0.0
        %2026 = vmatpush1.msra.mxu0 0.0
        %2027 = vmatprep.subr.mxu0 0.0
        %2028 = vmatpush1.msra.mxu0 0.0
        %2029 = vmatprep.subr.mxu0 0.0
        %2030 = vmatpush1.msra.mxu0 0.0
        %2031 = vmatprep.subr.mxu0 0.0
        %2032 = vmatpush1.msra.mxu0 0.0
        %2033 = vmatprep.subr.mxu0 0.0
        %2034 = vmatpush1.msra.mxu0 0.0
        %2035 = vmatprep.subr.mxu0 0.0
        %2036 = vmatpush1.msra.mxu0 0.0
        %2037 = vmatprep.subr.mxu0 0.0
        %2038 = vmatpush1.msra.mxu0 0.0
        %2039 = vmatprep.subr.mxu0 0.0
        %2040 = vmatpush1.msra.mxu0 0.0
        %2041 = vmatprep.subr.mxu0 0.0
        %2042 = vmatpush1.msra.mxu0 0.0
        %2043 = vmatprep.subr.mxu0 0.0
        %2044 = vmatpush1.msra.mxu0 0.0
        %2045 = vmatprep.subr.mxu0 0.0
        %2046 = vmatpush1.msra.mxu0 0.0
        %2047 = vmatprep.mubr.f32.mxu0 0.0
        %2048 = vmatmul.mubr.f32.gmra.mrb[0].mxu0 %v1972
        %v2049 = vpop.f32.mrb[0].mxu0
        %v2050 = vadd.f32 0.0, %v2049
        %v2051 = vpop.f32.mrb[0].mxu0
        %2052 = vmatprep.mubr.f32.mxu0 0.0
        %2053 = vmatmul.mubr.f32.gmra.mrb[0].mxu0 %v1975
        %v2054 = vpop.f32.mrb[0].mxu0
        %v2055 = vadd.f32 0.0, %v2054
        %v2056 = vpop.f32.mrb[0].mxu0
        %2057 = vmatprep.mubr.f32.mxu0 0.0
        %2058 = vmatmul.mubr.f32.gmra.mrb[0].mxu0 %v1978
        %v2059 = vpop.f32.mrb[0].mxu0
        %v2060 = vadd.f32 0.0, %v2059
        %v2061 = vpop.f32.mrb[0].mxu0
        %2062 = vmatprep.mubr.f32.mxu0 0.0
        %2063 = vmatmul.mubr.f32.gmra.mrb[0].mxu0 %v1981
        %v2064 = vpop.f32.mrb[0].mxu0
        %v2065 = vadd.f32 0.0, %v2064
        %v2066 = vpop.f32.mrb[0].mxu0
        %2067 = vdwg.mxu0
        %v2068 = vsel %vm1379, %v1821, 0
        %2070 = vmatprep.subr.mxu0 0.0
        %2071 = vmatpush1.msra.mxu0 %v1165
        %2072 = vmatprep.subr.mxu0 0.0
        %2073 = vmatpush1.msra.mxu0 0.0
        %2074 = vmatprep.subr.mxu0 0.0
        %2075 = vmatpush1.msra.mxu0 0.0
        %2076 = vmatprep.subr.mxu0 0.0
        %2077 = vmatpush1.msra.mxu0 0.0
        %2078 = vmatprep.subr.mxu0 0.0
        %2079 = vmatpush1.msra.mxu0 0.0
        %2080 = vmatprep.subr.mxu0 0.0
        %2081 = vmatpush1.msra.mxu0 0.0
        %2082 = vmatprep.subr.mxu0 0.0
        %2083 = vmatpush1.msra.mxu0 0.0
        %2084 = vmatprep.subr.mxu0 0.0
        %2085 = vmatpush1.msra.mxu0 0.0
        %2086 = vmatprep.subr.mxu0 0.0
        %2087 = vmatpush1.msra.mxu0 0.0
        %2088 = vmatprep.subr.mxu0 0.0
        %2089 = vmatpush1.msra.mxu0 0.0
        %2090 = vmatprep.subr.mxu0 0.0
        %2091 = vmatpush1.msra.mxu0 0.0
        %2092 = vmatprep.subr.mxu0 0.0
        %2093 = vmatpush1.msra.mxu0 0.0
        %2094 = vmatprep.subr.mxu0 0.0
        %2095 = vmatpush1.msra.mxu0 0.0
        %2096 = vmatprep.subr.mxu0 0.0
        %2097 = vmatpush1.msra.mxu0 0.0
        %2098 = vmatprep.subr.mxu0 0.0
        %2099 = vmatpush1.msra.mxu0 0.0
        %2100 = vmatprep.subr.mxu0 0.0
        %2101 = vmatpush1.msra.mxu0 0.0
        %2102 = vmatprep.subr.mxu0 0.0
        %2103 = vmatpush1.msra.mxu0 0.0
        %2104 = vmatprep.subr.mxu0 0.0
        %2105 = vmatpush1.msra.mxu0 0.0
        %2106 = vmatprep.subr.mxu0 0.0
        %2107 = vmatpush1.msra.mxu0 0.0
        %2108 = vmatprep.subr.mxu0 0.0
        %2109 = vmatpush1.msra.mxu0 0.0
        %2110 = vmatprep.subr.mxu0 0.0
        %2111 = vmatpush1.msra.mxu0 0.0
        %2112 = vmatprep.subr.mxu0 0.0
        %2113 = vmatpush1.msra.mxu0 0.0
        %2114 = vmatprep.subr.mxu0 0.0
        %2115 = vmatpush1.msra.mxu0 0.0
        %2116 = vmatprep.subr.mxu0 0.0
        %2117 = vmatpush1.msra.mxu0 0.0
        %2118 = vmatprep.subr.mxu0 0.0
        %2119 = vmatpush1.msra.mxu0 0.0
        %2120 = vmatprep.subr.mxu0 0.0
        %2121 = vmatpush1.msra.mxu0 0.0
        %2122 = vmatprep.subr.mxu0 0.0
        %2123 = vmatpush1.msra.mxu0 0.0
        %2124 = vmatprep.subr.mxu0 0.0
        %2125 = vmatpush1.msra.mxu0 0.0
        %2126 = vmatprep.subr.mxu0 0.0
        %2127 = vmatpush1.msra.mxu0 0.0
        %2128 = vmatprep.subr.mxu0 0.0
        %2129 = vmatpush1.msra.mxu0 0.0
        %2130 = vmatprep.subr.mxu0 0.0
        %2131 = vmatpush1.msra.mxu0 0.0
        %2132 = vmatprep.subr.mxu0 0.0
        %2133 = vmatpush1.msra.mxu0 0.0
        %2134 = vmatprep.mubr.f32.mxu0 0.0
        %2135 = vmatmul.mubr.f32.gmra.mrb[0].mxu0 %v2068
        %v2136 = vpop.f32.mrb[0].mxu0
        %v2137 = vadd.f32 %v2050, %v2136
        %v2138 = vpop.f32.mrb[0].mxu0
        %2139 = vdwg.mxu0
        %v2140 = vsel %vm1379, %v1822, 0
        %2142 = vmatprep.subr.mxu0 0.0
        %2143 = vmatpush1.msra.mxu0 %v1235
        %2144 = vmatprep.subr.mxu0 0.0
        %2145 = vmatpush1.msra.mxu0 0.0
        %2146 = vmatprep.subr.mxu0 0.0
        %2147 = vmatpush1.msra.mxu0 0.0
        %2148 = vmatprep.subr.mxu0 0.0
        %2149 = vmatpush1.msra.mxu0 0.0
        %2150 = vmatprep.subr.mxu0 0.0
        %2151 = vmatpush1.msra.mxu0 0.0
        %2152 = vmatprep.subr.mxu0 0.0
        %2153 = vmatpush1.msra.mxu0 0.0
        %2154 = vmatprep.subr.mxu0 0.0
        %2155 = vmatpush1.msra.mxu0 0.0
        %2156 = vmatprep.subr.mxu0 0.0
        %2157 = vmatpush1.msra.mxu0 0.0
        %2158 = vmatprep.subr.mxu0 0.0
        %2159 = vmatpush1.msra.mxu0 0.0
        %2160 = vmatprep.subr.mxu0 0.0
        %2161 = vmatpush1.msra.mxu0 0.0
        %2162 = vmatprep.subr.mxu0 0.0
        %2163 = vmatpush1.msra.mxu0 0.0
        %2164 = vmatprep.subr.mxu0 0.0
        %2165 = vmatpush1.msra.mxu0 0.0
        %2166 = vmatprep.subr.mxu0 0.0
        %2167 = vmatpush1.msra.mxu0 0.0
        %2168 = vmatprep.subr.mxu0 0.0
        %2169 = vmatpush1.msra.mxu0 0.0
        %2170 = vmatprep.subr.mxu0 0.0
        %2171 = vmatpush1.msra.mxu0 0.0
        %2172 = vmatprep.subr.mxu0 0.0
        %2173 = vmatpush1.msra.mxu0 0.0
        %2174 = vmatprep.subr.mxu0 0.0
        %2175 = vmatpush1.msra.mxu0 0.0
        %2176 = vmatprep.subr.mxu0 0.0
        %2177 = vmatpush1.msra.mxu0 0.0
        %2178 = vmatprep.subr.mxu0 0.0
        %2179 = vmatpush1.msra.mxu0 0.0
        %2180 = vmatprep.subr.mxu0 0.0
        %2181 = vmatpush1.msra.mxu0 0.0
        %2182 = vmatprep.subr.mxu0 0.0
        %2183 = vmatpush1.msra.mxu0 0.0
        %2184 = vmatprep.subr.mxu0 0.0
        %2185 = vmatpush1.msra.mxu0 0.0
        %2186 = vmatprep.subr.mxu0 0.0
        %2187 = vmatpush1.msra.mxu0 0.0
        %2188 = vmatprep.subr.mxu0 0.0
        %2189 = vmatpush1.msra.mxu0 0.0
        %2190 = vmatprep.subr.mxu0 0.0
        %2191 = vmatpush1.msra.mxu0 0.0
        %2192 = vmatprep.subr.mxu0 0.0
        %2193 = vmatpush1.msra.mxu0 0.0
        %2194 = vmatprep.subr.mxu0 0.0
        %2195 = vmatpush1.msra.mxu0 0.0
        %2196 = vmatprep.subr.mxu0 0.0
        %2197 = vmatpush1.msra.mxu0 0.0
        %2198 = vmatprep.subr.mxu0 0.0
        %2199 = vmatpush1.msra.mxu0 0.0
        %2200 = vmatprep.subr.mxu0 0.0
        %2201 = vmatpush1.msra.mxu0 0.0
        %2202 = vmatprep.subr.mxu0 0.0
        %2203 = vmatpush1.msra.mxu0 0.0
        %2204 = vmatprep.subr.mxu0 0.0
        %2205 = vmatpush1.msra.mxu0 0.0
        %2206 = vmatprep.mubr.f32.mxu0 0.0
        %2207 = vmatmul.mubr.f32.gmra.mrb[0].mxu0 %v2140
        %v2208 = vpop.f32.mrb[0].mxu0
        %v2209 = vadd.f32 %v2055, %v2208
        %v2210 = vpop.f32.mrb[0].mxu0
        %2211 = vdwg.mxu0
        %v2212 = vsel %vm1379, %v1823, 0
        %2214 = vmatprep.subr.mxu0 0.0
        %2215 = vmatpush1.msra.mxu0 %v1305
        %2216 = vmatprep.subr.mxu0 0.0
        %2217 = vmatpush1.msra.mxu0 0.0
        %2218 = vmatprep.subr.mxu0 0.0
        %2219 = vmatpush1.msra.mxu0 0.0
        %2220 = vmatprep.subr.mxu0 0.0
        %2221 = vmatpush1.msra.mxu0 0.0
        %2222 = vmatprep.subr.mxu0 0.0
        %2223 = vmatpush1.msra.mxu0 0.0
        %2224 = vmatprep.subr.mxu0 0.0
        %2225 = vmatpush1.msra.mxu0 0.0
        %2226 = vmatprep.subr.mxu0 0.0
        %2227 = vmatpush1.msra.mxu0 0.0
        %2228 = vmatprep.subr.mxu0 0.0
        %2229 = vmatpush1.msra.mxu0 0.0
        %2230 = vmatprep.subr.mxu0 0.0
        %2231 = vmatpush1.msra.mxu0 0.0
        %2232 = vmatprep.subr.mxu0 0.0
        %2233 = vmatpush1.msra.mxu0 0.0
        %2234 = vmatprep.subr.mxu0 0.0
        %2235 = vmatpush1.msra.mxu0 0.0
        %2236 = vmatprep.subr.mxu0 0.0
        %2237 = vmatpush1.msra.mxu0 0.0
        %2238 = vmatprep.subr.mxu0 0.0
        %2239 = vmatpush1.msra.mxu0 0.0
        %2240 = vmatprep.subr.mxu0 0.0
        %2241 = vmatpush1.msra.mxu0 0.0
        %2242 = vmatprep.subr.mxu0 0.0
        %2243 = vmatpush1.msra.mxu0 0.0
        %2244 = vmatprep.subr.mxu0 0.0
        %2245 = vmatpush1.msra.mxu0 0.0
        %2246 = vmatprep.subr.mxu0 0.0
        %2247 = vmatpush1.msra.mxu0 0.0
        %2248 = vmatprep.subr.mxu0 0.0
        %2249 = vmatpush1.msra.mxu0 0.0
        %2250 = vmatprep.subr.mxu0 0.0
        %2251 = vmatpush1.msra.mxu0 0.0
        %2252 = vmatprep.subr.mxu0 0.0
        %2253 = vmatpush1.msra.mxu0 0.0
        %2254 = vmatprep.subr.mxu0 0.0
        %2255 = vmatpush1.msra.mxu0 0.0
        %2256 = vmatprep.subr.mxu0 0.0
        %2257 = vmatpush1.msra.mxu0 0.0
        %2258 = vmatprep.subr.mxu0 0.0
        %2259 = vmatpush1.msra.mxu0 0.0
        %2260 = vmatprep.subr.mxu0 0.0
        %2261 = vmatpush1.msra.mxu0 0.0
        %2262 = vmatprep.subr.mxu0 0.0
        %2263 = vmatpush1.msra.mxu0 0.0
        %2264 = vmatprep.subr.mxu0 0.0
        %2265 = vmatpush1.msra.mxu0 0.0
        %2266 = vmatprep.subr.mxu0 0.0
        %2267 = vmatpush1.msra.mxu0 0.0
        %2268 = vmatprep.subr.mxu0 0.0
        %2269 = vmatpush1.msra.mxu0 0.0
        %2270 = vmatprep.subr.mxu0 0.0
        %2271 = vmatpush1.msra.mxu0 0.0
        %2272 = vmatprep.subr.mxu0 0.0
        %2273 = vmatpush1.msra.mxu0 0.0
        %2274 = vmatprep.subr.mxu0 0.0
        %2275 = vmatpush1.msra.mxu0 0.0
        %2276 = vmatprep.subr.mxu0 0.0
        %2277 = vmatpush1.msra.mxu0 0.0
        %2278 = vmatprep.mubr.f32.mxu0 0.0
        %2279 = vmatmul.mubr.f32.gmra.mrb[0].mxu0 %v2212
        %v2280 = vpop.f32.mrb[0].mxu0
        %v2281 = vadd.f32 %v2060, %v2280
        %v2282 = vpop.f32.mrb[0].mxu0
        %2283 = vdwg.mxu0
        %v2284 = vsel %vm1379, %v1824, 0
        %2286 = vmatprep.subr.mxu0 0.0
        %2287 = vmatpush1.msra.mxu0 %v1375
        %2288 = vmatprep.subr.mxu0 0.0
        %2289 = vmatpush1.msra.mxu0 0.0
        %2290 = vmatprep.subr.mxu0 0.0
        %2291 = vmatpush1.msra.mxu0 0.0
        %2292 = vmatprep.subr.mxu0 0.0
        %2293 = vmatpush1.msra.mxu0 0.0
        %2294 = vmatprep.subr.mxu0 0.0
        %2295 = vmatpush1.msra.mxu0 0.0
        %2296 = vmatprep.subr.mxu0 0.0
        %2297 = vmatpush1.msra.mxu0 0.0
        %2298 = vmatprep.subr.mxu0 0.0
        %2299 = vmatpush1.msra.mxu0 0.0
        %2300 = vmatprep.subr.mxu0 0.0
        %2301 = vmatpush1.msra.mxu0 0.0
        %2302 = vmatprep.subr.mxu0 0.0
        %2303 = vmatpush1.msra.mxu0 0.0
        %2304 = vmatprep.subr.mxu0 0.0
        %2305 = vmatpush1.msra.mxu0 0.0
        %2306 = vmatprep.subr.mxu0 0.0
        %2307 = vmatpush1.msra.mxu0 0.0
        %2308 = vmatprep.subr.mxu0 0.0
        %2309 = vmatpush1.msra.mxu0 0.0
        %2310 = vmatprep.subr.mxu0 0.0
        %2311 = vmatpush1.msra.mxu0 0.0
        %2312 = vmatprep.subr.mxu0 0.0
        %2313 = vmatpush1.msra.mxu0 0.0
        %2314 = vmatprep.subr.mxu0 0.0
        %2315 = vmatpush1.msra.mxu0 0.0
        %2316 = vmatprep.subr.mxu0 0.0
        %2317 = vmatpush1.msra.mxu0 0.0
        %2318 = vmatprep.subr.mxu0 0.0
        %2319 = vmatpush1.msra.mxu0 0.0
        %2320 = vmatprep.subr.mxu0 0.0
        %2321 = vmatpush1.msra.mxu0 0.0
        %2322 = vmatprep.subr.mxu0 0.0
        %2323 = vmatpush1.msra.mxu0 0.0
        %2324 = vmatprep.subr.mxu0 0.0
        %2325 = vmatpush1.msra.mxu0 0.0
        %2326 = vmatprep.subr.mxu0 0.0
        %2327 = vmatpush1.msra.mxu0 0.0
        %2328 = vmatprep.subr.mxu0 0.0
        %2329 = vmatpush1.msra.mxu0 0.0
        %2330 = vmatprep.subr.mxu0 0.0
        %2331 = vmatpush1.msra.mxu0 0.0
        %2332 = vmatprep.subr.mxu0 0.0
        %2333 = vmatpush1.msra.mxu0 0.0
        %2334 = vmatprep.subr.mxu0 0.0
        %2335 = vmatpush1.msra.mxu0 0.0
        %2336 = vmatprep.subr.mxu0 0.0
        %2337 = vmatpush1.msra.mxu0 0.0
        %2338 = vmatprep.subr.mxu0 0.0
        %2339 = vmatpush1.msra.mxu0 0.0
        %2340 = vmatprep.subr.mxu0 0.0
        %2341 = vmatpush1.msra.mxu0 0.0
        %2342 = vmatprep.subr.mxu0 0.0
        %2343 = vmatpush1.msra.mxu0 0.0
        %2344 = vmatprep.subr.mxu0 0.0
        %2345 = vmatpush1.msra.mxu0 0.0
        %2346 = vmatprep.subr.mxu0 0.0
        %2347 = vmatpush1.msra.mxu0 0.0
        %2348 = vmatprep.subr.mxu0 0.0
        %2349 = vmatpush1.msra.mxu0 0.0
        %2350 = vmatprep.mubr.f32.mxu0 0.0
        %2351 = vmatmul.mubr.f32.gmra.mrb[0].mxu0 %v2284
        %v2352 = vpop.f32.mrb[0].mxu0
        %v2353 = vadd.f32 %v2065, %v2352
        %v2354 = vpop.f32.mrb[0].mxu0
        %2355 = vdwg.mxu0
        %s2356 = scalar_lea.vmem %s3, 384
        %v2357 = vld [vmem:[%s2356] sm:$0xff]
        %v2358 = vld [vmem:[%s2356 + $0x8] sm:$0xff]
        %v2359 = vld [vmem:[%s2356 + $0x10] sm:$0xff]
        %v2360 = vld [vmem:[%s2356 + $0x18] sm:$0xff]
        %v2361 = vld [vmem:[%s2356 + $0x20] sm:$0xff]
        %v2362 = vld [vmem:[%s2356 + $0x28] sm:$0xff]
        %v2363 = vld [vmem:[%s2356 + $0x30] sm:$0xff]
        %v2364 = vld [vmem:[%s2356 + $0x38] sm:$0xff]
        %v2365 = vld [vmem:[%s2356 + $0x40] sm:$0xff]
        %v2366 = vld [vmem:[%s2356 + $0x48] sm:$0xff]
        %v2367 = vld [vmem:[%s2356 + $0x50] sm:$0xff]
        %v2368 = vld [vmem:[%s2356 + $0x58] sm:$0xff]
        %v2369 = vld [vmem:[%s2356 + $0x60] sm:$0xff]
        %v2370 = vld [vmem:[%s2356 + $0x68] sm:$0xff]
        %v2371 = vld [vmem:[%s2356 + $0x70] sm:$0xff]
        %v2372 = vld [vmem:[%s2356 + $0x78] sm:$0xff]
        %v2374 = vsel %vm1379, %v2137, 0
        %v2377 = vsel %vm1379, %v2357, 0
        %v2380 = vsel %vm1379, %v2358, 0
        %v2383 = vsel %vm1379, %v2359, 0
        %v2386 = vsel %vm1379, %v2360, 0
        %2388 = vmatprep.subr.mxu0 0.0
        %2389 = vmatpush1.xpose.msra.mxu0 %v2377
        %2390 = vmatprep.subr.mxu0 0.0
        %2391 = vmatpush1.xpose.msra.mxu0 %v2380
        %2392 = vmatprep.subr.mxu0 0.0
        %2393 = vmatpush1.xpose.msra.mxu0 %v2383
        %2394 = vmatprep.subr.mxu0 0.0
        %2395 = vmatpush1.xpose.msra.mxu0 %v2386
        %2396 = vmatprep.subr.mxu0 0.0
        %2397 = vmatpush1.xpose.msra.mxu0 0.0
        %2398 = vmatprep.subr.mxu0 0.0
        %2399 = vmatpush1.xpose.msra.mxu0 0.0
        %2400 = vmatprep.subr.mxu0 0.0
        %2401 = vmatpush1.xpose.msra.mxu0 0.0
        %2402 = vmatprep.subr.mxu0 0.0
        %2403 = vmatpush1.xpose.msra.mxu0 0.0
        %2404 = vmatprep.subr.mxu0 0.0
        %2405 = vmatpush1.xpose.msra.mxu0 0.0
        %2406 = vmatprep.subr.mxu0 0.0
        %2407 = vmatpush1.xpose.msra.mxu0 0.0
        %2408 = vmatprep.subr.mxu0 0.0
        %2409 = vmatpush1.xpose.msra.mxu0 0.0
        %2410 = vmatprep.subr.mxu0 0.0
        %2411 = vmatpush1.xpose.msra.mxu0 0.0
        %2412 = vmatprep.subr.mxu0 0.0
        %2413 = vmatpush1.xpose.msra.mxu0 0.0
        %2414 = vmatprep.subr.mxu0 0.0
        %2415 = vmatpush1.xpose.msra.mxu0 0.0
        %2416 = vmatprep.subr.mxu0 0.0
        %2417 = vmatpush1.xpose.msra.mxu0 0.0
        %2418 = vmatprep.subr.mxu0 0.0
        %2419 = vmatpush1.xpose.msra.mxu0 0.0
        %2420 = vmatprep.subr.mxu0 0.0
        %2421 = vmatpush1.xpose.msra.mxu0 0.0
        %2422 = vmatprep.subr.mxu0 0.0
        %2423 = vmatpush1.xpose.msra.mxu0 0.0
        %2424 = vmatprep.subr.mxu0 0.0
        %2425 = vmatpush1.xpose.msra.mxu0 0.0
        %2426 = vmatprep.subr.mxu0 0.0
        %2427 = vmatpush1.xpose.msra.mxu0 0.0
        %2428 = vmatprep.subr.mxu0 0.0
        %2429 = vmatpush1.xpose.msra.mxu0 0.0
        %2430 = vmatprep.subr.mxu0 0.0
        %2431 = vmatpush1.xpose.msra.mxu0 0.0
        %2432 = vmatprep.subr.mxu0 0.0
        %2433 = vmatpush1.xpose.msra.mxu0 0.0
        %2434 = vmatprep.subr.mxu0 0.0
        %2435 = vmatpush1.xpose.msra.mxu0 0.0
        %2436 = vmatprep.subr.mxu0 0.0
        %2437 = vmatpush1.xpose.msra.mxu0 0.0
        %2438 = vmatprep.subr.mxu0 0.0
        %2439 = vmatpush1.xpose.msra.mxu0 0.0
        %2440 = vmatprep.subr.mxu0 0.0
        %2441 = vmatpush1.xpose.msra.mxu0 0.0
        %2442 = vmatprep.subr.mxu0 0.0
        %2443 = vmatpush1.xpose.msra.mxu0 0.0
        %2444 = vmatprep.subr.mxu0 0.0
        %2445 = vmatpush1.xpose.msra.mxu0 0.0
        %2446 = vmatprep.subr.mxu0 0.0
        %2447 = vmatpush1.xpose.msra.mxu0 0.0
        %2448 = vmatprep.subr.mxu0 0.0
        %2449 = vmatpush1.xpose.msra.mxu0 0.0
        %2450 = vmatprep.subr.mxu0 0.0
        %2451 = vmatpush1.xpose.msra.mxu0 0.0
        %2452 = vmatprep.mubr.f32.mxu0 0.0
        %2453 = vmatmul.mubr.f32.gmra.mrb[0].mxu0 %v2374
        %v2454 = vpop.f32.mrb[0].mxu0
        %v2455 = vadd.f32 0.0, %v2454
        %v2456 = vpop.f32.mrb[0].mxu0
        %2457 = vdwg.mxu0
        %v2459 = vsel %vm1379, %v2209, 0
        %v2462 = vsel %vm1379, %v2361, 0
        %v2465 = vsel %vm1379, %v2362, 0
        %v2468 = vsel %vm1379, %v2363, 0
        %v2471 = vsel %vm1379, %v2364, 0
        %2473 = vmatprep.subr.mxu0 0.0
        %2474 = vmatpush1.xpose.msra.mxu0 %v2462
        %2475 = vmatprep.subr.mxu0 0.0
        %2476 = vmatpush1.xpose.msra.mxu0 %v2465
        %2477 = vmatprep.subr.mxu0 0.0
        %2478 = vmatpush1.xpose.msra.mxu0 %v2468
        %2479 = vmatprep.subr.mxu0 0.0
        %2480 = vmatpush1.xpose.msra.mxu0 %v2471
        %2481 = vmatprep.subr.mxu0 0.0
        %2482 = vmatpush1.xpose.msra.mxu0 0.0
        %2483 = vmatprep.subr.mxu0 0.0
        %2484 = vmatpush1.xpose.msra.mxu0 0.0
        %2485 = vmatprep.subr.mxu0 0.0
        %2486 = vmatpush1.xpose.msra.mxu0 0.0
        %2487 = vmatprep.subr.mxu0 0.0
        %2488 = vmatpush1.xpose.msra.mxu0 0.0
        %2489 = vmatprep.subr.mxu0 0.0
        %2490 = vmatpush1.xpose.msra.mxu0 0.0
        %2491 = vmatprep.subr.mxu0 0.0
        %2492 = vmatpush1.xpose.msra.mxu0 0.0
        %2493 = vmatprep.subr.mxu0 0.0
        %2494 = vmatpush1.xpose.msra.mxu0 0.0
        %2495 = vmatprep.subr.mxu0 0.0
        %2496 = vmatpush1.xpose.msra.mxu0 0.0
        %2497 = vmatprep.subr.mxu0 0.0
        %2498 = vmatpush1.xpose.msra.mxu0 0.0
        %2499 = vmatprep.subr.mxu0 0.0
        %2500 = vmatpush1.xpose.msra.mxu0 0.0
        %2501 = vmatprep.subr.mxu0 0.0
        %2502 = vmatpush1.xpose.msra.mxu0 0.0
        %2503 = vmatprep.subr.mxu0 0.0
        %2504 = vmatpush1.xpose.msra.mxu0 0.0
        %2505 = vmatprep.subr.mxu0 0.0
        %2506 = vmatpush1.xpose.msra.mxu0 0.0
        %2507 = vmatprep.subr.mxu0 0.0
        %2508 = vmatpush1.xpose.msra.mxu0 0.0
        %2509 = vmatprep.subr.mxu0 0.0
        %2510 = vmatpush1.xpose.msra.mxu0 0.0
        %2511 = vmatprep.subr.mxu0 0.0
        %2512 = vmatpush1.xpose.msra.mxu0 0.0
        %2513 = vmatprep.subr.mxu0 0.0
        %2514 = vmatpush1.xpose.msra.mxu0 0.0
        %2515 = vmatprep.subr.mxu0 0.0
        %2516 = vmatpush1.xpose.msra.mxu0 0.0
        %2517 = vmatprep.subr.mxu0 0.0
        %2518 = vmatpush1.xpose.msra.mxu0 0.0
        %2519 = vmatprep.subr.mxu0 0.0
        %2520 = vmatpush1.xpose.msra.mxu0 0.0
        %2521 = vmatprep.subr.mxu0 0.0
        %2522 = vmatpush1.xpose.msra.mxu0 0.0
        %2523 = vmatprep.subr.mxu0 0.0
        %2524 = vmatpush1.xpose.msra.mxu0 0.0
        %2525 = vmatprep.subr.mxu0 0.0
        %2526 = vmatpush1.xpose.msra.mxu0 0.0
        %2527 = vmatprep.subr.mxu0 0.0
        %2528 = vmatpush1.xpose.msra.mxu0 0.0
        %2529 = vmatprep.subr.mxu0 0.0
        %2530 = vmatpush1.xpose.msra.mxu0 0.0
        %2531 = vmatprep.subr.mxu0 0.0
        %2532 = vmatpush1.xpose.msra.mxu0 0.0
        %2533 = vmatprep.subr.mxu0 0.0
        %2534 = vmatpush1.xpose.msra.mxu0 0.0
        %2535 = vmatprep.subr.mxu0 0.0
        %2536 = vmatpush1.xpose.msra.mxu0 0.0
        %2537 = vmatprep.mubr.f32.mxu0 0.0
        %2538 = vmatmul.mubr.f32.gmra.mrb[0].mxu0 %v2459
        %v2539 = vpop.f32.mrb[0].mxu0
        %v2540 = vadd.f32 0.0, %v2539
        %v2541 = vpop.f32.mrb[0].mxu0
        %2542 = vdwg.mxu0
        %v2544 = vsel %vm1379, %v2281, 0
        %v2547 = vsel %vm1379, %v2365, 0
        %v2550 = vsel %vm1379, %v2366, 0
        %v2553 = vsel %vm1379, %v2367, 0
        %v2556 = vsel %vm1379, %v2368, 0
        %2558 = vmatprep.subr.mxu0 0.0
        %2559 = vmatpush1.xpose.msra.mxu0 %v2547
        %2560 = vmatprep.subr.mxu0 0.0
        %2561 = vmatpush1.xpose.msra.mxu0 %v2550
        %2562 = vmatprep.subr.mxu0 0.0
        %2563 = vmatpush1.xpose.msra.mxu0 %v2553
        %2564 = vmatprep.subr.mxu0 0.0
        %2565 = vmatpush1.xpose.msra.mxu0 %v2556
        %2566 = vmatprep.subr.mxu0 0.0
        %2567 = vmatpush1.xpose.msra.mxu0 0.0
        %2568 = vmatprep.subr.mxu0 0.0
        %2569 = vmatpush1.xpose.msra.mxu0 0.0
        %2570 = vmatprep.subr.mxu0 0.0
        %2571 = vmatpush1.xpose.msra.mxu0 0.0
        %2572 = vmatprep.subr.mxu0 0.0
        %2573 = vmatpush1.xpose.msra.mxu0 0.0
        %2574 = vmatprep.subr.mxu0 0.0
        %2575 = vmatpush1.xpose.msra.mxu0 0.0
        %2576 = vmatprep.subr.mxu0 0.0
        %2577 = vmatpush1.xpose.msra.mxu0 0.0
        %2578 = vmatprep.subr.mxu0 0.0
        %2579 = vmatpush1.xpose.msra.mxu0 0.0
        %2580 = vmatprep.subr.mxu0 0.0
        %2581 = vmatpush1.xpose.msra.mxu0 0.0
        %2582 = vmatprep.subr.mxu0 0.0
        %2583 = vmatpush1.xpose.msra.mxu0 0.0
        %2584 = vmatprep.subr.mxu0 0.0
        %2585 = vmatpush1.xpose.msra.mxu0 0.0
        %2586 = vmatprep.subr.mxu0 0.0
        %2587 = vmatpush1.xpose.msra.mxu0 0.0
        %2588 = vmatprep.subr.mxu0 0.0
        %2589 = vmatpush1.xpose.msra.mxu0 0.0
        %2590 = vmatprep.subr.mxu0 0.0
        %2591 = vmatpush1.xpose.msra.mxu0 0.0
        %2592 = vmatprep.subr.mxu0 0.0
        %2593 = vmatpush1.xpose.msra.mxu0 0.0
        %2594 = vmatprep.subr.mxu0 0.0
        %2595 = vmatpush1.xpose.msra.mxu0 0.0
        %2596 = vmatprep.subr.mxu0 0.0
        %2597 = vmatpush1.xpose.msra.mxu0 0.0
        %2598 = vmatprep.subr.mxu0 0.0
        %2599 = vmatpush1.xpose.msra.mxu0 0.0
        %2600 = vmatprep.subr.mxu0 0.0
        %2601 = vmatpush1.xpose.msra.mxu0 0.0
        %2602 = vmatprep.subr.mxu0 0.0
        %2603 = vmatpush1.xpose.msra.mxu0 0.0
        %2604 = vmatprep.subr.mxu0 0.0
        %2605 = vmatpush1.xpose.msra.mxu0 0.0
        %2606 = vmatprep.subr.mxu0 0.0
        %2607 = vmatpush1.xpose.msra.mxu0 0.0
        %2608 = vmatprep.subr.mxu0 0.0
        %2609 = vmatpush1.xpose.msra.mxu0 0.0
        %2610 = vmatprep.subr.mxu0 0.0
        %2611 = vmatpush1.xpose.msra.mxu0 0.0
        %2612 = vmatprep.subr.mxu0 0.0
        %2613 = vmatpush1.xpose.msra.mxu0 0.0
        %2614 = vmatprep.subr.mxu0 0.0
        %2615 = vmatpush1.xpose.msra.mxu0 0.0
        %2616 = vmatprep.subr.mxu0 0.0
        %2617 = vmatpush1.xpose.msra.mxu0 0.0
        %2618 = vmatprep.subr.mxu0 0.0
        %2619 = vmatpush1.xpose.msra.mxu0 0.0
        %2620 = vmatprep.subr.mxu0 0.0
        %2621 = vmatpush1.xpose.msra.mxu0 0.0
        %2622 = vmatprep.mubr.f32.mxu0 0.0
        %2623 = vmatmul.mubr.f32.gmra.mrb[0].mxu0 %v2544
        %v2624 = vpop.f32.mrb[0].mxu0
        %v2625 = vadd.f32 0.0, %v2624
        %v2626 = vpop.f32.mrb[0].mxu0
        %2627 = vdwg.mxu0
        %v2629 = vsel %vm1379, %v2353, 0
        %v2632 = vsel %vm1379, %v2369, 0
        %v2635 = vsel %vm1379, %v2370, 0
        %v2638 = vsel %vm1379, %v2371, 0
        %v2641 = vsel %vm1379, %v2372, 0
        %2643 = vmatprep.subr.mxu0 0.0
        %2644 = vmatpush1.xpose.msra.mxu0 %v2632
        %2645 = vmatprep.subr.mxu0 0.0
        %2646 = vmatpush1.xpose.msra.mxu0 %v2635
        %2647 = vmatprep.subr.mxu0 0.0
        %2648 = vmatpush1.xpose.msra.mxu0 %v2638
        %2649 = vmatprep.subr.mxu0 0.0
        %2650 = vmatpush1.xpose.msra.mxu0 %v2641
        %2651 = vmatprep.subr.mxu0 0.0
        %2652 = vmatpush1.xpose.msra.mxu0 0.0
        %2653 = vmatprep.subr.mxu0 0.0
        %2654 = vmatpush1.xpose.msra.mxu0 0.0
        %2655 = vmatprep.subr.mxu0 0.0
        %2656 = vmatpush1.xpose.msra.mxu0 0.0
        %2657 = vmatprep.subr.mxu0 0.0
        %2658 = vmatpush1.xpose.msra.mxu0 0.0
        %2659 = vmatprep.subr.mxu0 0.0
        %2660 = vmatpush1.xpose.msra.mxu0 0.0
        %2661 = vmatprep.subr.mxu0 0.0
        %2662 = vmatpush1.xpose.msra.mxu0 0.0
        %2663 = vmatprep.subr.mxu0 0.0
        %2664 = vmatpush1.xpose.msra.mxu0 0.0
        %2665 = vmatprep.subr.mxu0 0.0
        %2666 = vmatpush1.xpose.msra.mxu0 0.0
        %2667 = vmatprep.subr.mxu0 0.0
        %2668 = vmatpush1.xpose.msra.mxu0 0.0
        %2669 = vmatprep.subr.mxu0 0.0
        %2670 = vmatpush1.xpose.msra.mxu0 0.0
        %2671 = vmatprep.subr.mxu0 0.0
        %2672 = vmatpush1.xpose.msra.mxu0 0.0
        %2673 = vmatprep.subr.mxu0 0.0
        %2674 = vmatpush1.xpose.msra.mxu0 0.0
        %2675 = vmatprep.subr.mxu0 0.0
        %2676 = vmatpush1.xpose.msra.mxu0 0.0
        %2677 = vmatprep.subr.mxu0 0.0
        %2678 = vmatpush1.xpose.msra.mxu0 0.0
        %2679 = vmatprep.subr.mxu0 0.0
        %2680 = vmatpush1.xpose.msra.mxu0 0.0
        %2681 = vmatprep.subr.mxu0 0.0
        %2682 = vmatpush1.xpose.msra.mxu0 0.0
        %2683 = vmatprep.subr.mxu0 0.0
        %2684 = vmatpush1.xpose.msra.mxu0 0.0
        %2685 = vmatprep.subr.mxu0 0.0
        %2686 = vmatpush1.xpose.msra.mxu0 0.0
        %2687 = vmatprep.subr.mxu0 0.0
        %2688 = vmatpush1.xpose.msra.mxu0 0.0
        %2689 = vmatprep.subr.mxu0 0.0
        %2690 = vmatpush1.xpose.msra.mxu0 0.0
        %2691 = vmatprep.subr.mxu0 0.0
        %2692 = vmatpush1.xpose.msra.mxu0 0.0
        %2693 = vmatprep.subr.mxu0 0.0
        %2694 = vmatpush1.xpose.msra.mxu0 0.0
        %2695 = vmatprep.subr.mxu0 0.0
        %2696 = vmatpush1.xpose.msra.mxu0 0.0
        %2697 = vmatprep.subr.mxu0 0.0
        %2698 = vmatpush1.xpose.msra.mxu0 0.0
        %2699 = vmatprep.subr.mxu0 0.0
        %2700 = vmatpush1.xpose.msra.mxu0 0.0
        %2701 = vmatprep.subr.mxu0 0.0
        %2702 = vmatpush1.xpose.msra.mxu0 0.0
        %2703 = vmatprep.subr.mxu0 0.0
        %2704 = vmatpush1.xpose.msra.mxu0 0.0
        %2705 = vmatprep.subr.mxu0 0.0
        %2706 = vmatpush1.xpose.msra.mxu0 0.0
        %2707 = vmatprep.mubr.f32.mxu0 0.0
        %2708 = vmatmul.mubr.f32.gmra.mrb[0].mxu0 %v2629
        %v2709 = vpop.f32.mrb[0].mxu0
        %v2710 = vadd.f32 0.0, %v2709
        %v2711 = vpop.f32.mrb[0].mxu0
        %2712 = vdwg.mxu0
        %v2713 = vsel %vm398, %v2455, 0.0
        %v2714 = vsel %vm398, %v2540, 0.0
        %v2715 = vadd.f32 %v2713, %v2714
        %v2716 = vsel %vm398, %v2625, 0.0
        %v2717 = vadd.f32 %v2715, %v2716
        %v2718 = vsel %vm398, %v2710, 0.0
        %v2719 = vadd.f32 %v2717, %v2718
        %v2720 = vld [vmem:[%s5] sm:$0x1]
        %v2722 = vlaneseq
        %v2723 = vshrl.u32 %v2722, 7
        %v2724 = vsub.s32 0, %v2723
        %v2725 = vrot.slane %v2720, %v2724
        %v2727 = vadd.f32 %v2719, %v2725
        %2728 = vst.msk [vmem:[%s322] sm:$0xff] %vm398, %v2727
        %s2729 = sand.u32 %s213, 1
        %s2730 = scalar_lea.sflag [#allocation3], %s2729
        %s2731 = sand.u32 %s213, 1
        %s2732 = smul.addr %s2731, 8
        %s2733 = scalar_lea.vmem [#allocation2], %s2732
        // Predicated region
        $region53: #{relative_mha_forward.1} parent=51 // pred_check
          %p2734 = pneg %p223
        $region54: #{relative_mha_forward.1} parent=51 // pred_check_branch
          %2736 = sbr.rel (%p2734) target = $region56
        $region55: #{relative_mha_forward.1} parent=51 // pred_region
          %s2738 = ssub.s32 128, 128
          %2739 = vsyncadd %s2730, %s2738
          %s2740 = smul.addr %s22, 128
          %s2741 = scalar_lea.hbm %s8, %s2740
          %s2743 = sshll.u32 %s2733, 4
          %s2744 = int_to_ptr.vmem [resolvable:$true] %s2743
          %2746 = dma.vmem_to_hbm [thread:$0]  %s2744, 128, %s2741, %s2730
        $region56: #{relative_mha_forward.1} parent=51 // pred_fallthru
          _
      $region52: #{relative_mha_forward.1} parent=5 // pred_fallthru
        _
      %p2747 = scmp.le.s32.totalorder 2, %s17
      // Predicated region
      $region57: #{relative_mha_forward.1} parent=5 // pred_check
        %p2748 = pneg %p2747
      $region58: #{relative_mha_forward.1} parent=5 // pred_check_branch
        %2750 = sbr.rel (%p2748) target = $region60
      $region59: #{relative_mha_forward.1} parent=5 // pred_region
        %s2751 = ssub.s32 %s17, 2
        // Predicated region
        $region61: #{relative_mha_forward.1} parent=59 // pred_check
          %p2752 = pneg %p229
        $region62: #{relative_mha_forward.1} parent=59 // pred_check_branch
          %2754 = sbr.rel (%p2752) target = $region64
        $region63: #{relative_mha_forward.1} parent=59 // pred_region
          %s2755 = sand.u32 %s214, 1
          %s2756 = scalar_lea.sflag [#allocation3], %s2755
          %s2757 = sand.u32 %s214, 1
          %s2758 = smul.addr %s2757, 8
          %s2759 = scalar_lea.vmem [#allocation2], %s2758
          %2760 = dma.done %s2756, 128
        $region64: #{relative_mha_forward.1} parent=59 // pred_fallthru
          _
      $region60: #{relative_mha_forward.1} parent=5 // pred_fallthru
        _
    $region6: #{relative_mha_forward.1} parent=1 // loop_footer
      %s21 = sadd.s32 1, %s17
    $region7: #{relative_mha_forward.1} parent=1 // loop_footer_branch
      %16 = sbr.rel target = $region3
    $region8: #{relative_mha_forward.1} parent=1 // loop_exit
      _
    %2761 = vsyncpa [#allocation3], 1
    %s2762 = scalar_lea.sflag [#allocation3], 1
    %2763 = vsyncpa %s2762, 1

</llo_original>
